<compile_context>
chip_gen: v6e
topology: v6e:2x2x1
jax: 0.10.0
libtpu: 0.0.40
codegen_flags: <defaults>
</compile_context>

<pallas_src>
import functools
import math

import jax
import jax.numpy as jnp
from jax.experimental import pallas as pl
from jax.experimental.pallas import tpu as pltpu

RATIO = 0.5       # stands in for get_value('ratio')
BN_EPS = 1e-5


# ----------------------------------------------------------------------------
# Pallas kernel: fused 3x3 conv + folded (BN*gate) (+ residual) (+ ReLU) + mean|y|
# ----------------------------------------------------------------------------
def _fused_conv_kernel(x_ref, w_ref, scale_ref, bias_ref, *rest,
                       H, W, add_residual, apply_relu):
    if add_residual:
        res_ref, out_ref, ss_ref, xpad_ref, col_ref = rest
    else:
        res_ref = None
        out_ref, ss_ref, xpad_ref, col_ref = rest

    Cin = x_ref.shape[1]
    Cout = out_ref.shape[1]
    HW = H * W

    # (Cin, H*W) -> (H*W, Cin): one in-VMEM relayout per image (replaces the
    # previous full-tensor NCHW->NHWC transpose in HBM).
    x_sc = x_ref[0].T                                     # (H*W, Cin)

    # Zero-padded halo built in a VMEM scratch (no jnp.pad HBM copy).
    # Re-zero every step: scratch persists across grid steps and, with the
    # batch axis "parallel", a given core may not see program_id == 0.
    xpad_ref[...] = jnp.zeros_like(xpad_ref)
    xpad_ref[1:H + 1, 1:W + 1, :] = x_sc.reshape(H, W, Cin)

    # im2col ONCE into VMEM scratch, then a single fat matmul
    # (H*W, 9*Cin) x (9*Cin, Cout) instead of 9 tiny K=Cin matmuls.
    for dh in range(3):
        for dw in range(3):
            t = dh * 3 + dw
            win = xpad_ref[dh:dh + H, dw:dw + W, :]       # (H, W, Cin)
            col_ref[:, t * Cin:(t + 1) * Cin] = win.reshape(HW, Cin)

    acc = jnp.dot(col_ref[...], w_ref[...],
                  preferred_element_type=jnp.float32)     # (H*W, Cout)

    # Lane-dense orientation from here on: channels on sublanes, H*W on lanes.
    y = acc.T                                             # (Cout, H*W)
    y = y * scale_ref[0] + bias_ref[0]                    # folded BN*gate scale / bias*gate
    if add_residual:
        y = y + res_ref[0]                                # (Cin == Cout) residual
    if apply_relu:
        y = jnp.maximum(y, 0.0)

    out_ref[0] = y.astype(out_ref.dtype)
    # Fused per-channel spatial mean(|y|): feeds the next layer's gate MLP
    # without re-reading this activation from HBM.
    ss_ref[0] = jnp.mean(jnp.abs(y), axis=1, keepdims=True).astype(ss_ref.dtype)


def gated_conv_bn_pallas(x_flat, w_mat, eff_scale, eff_bias, H, W,
                         residual=None, apply_relu=True):
    """x_flat: (B, Cin, H*W) f32.  w_mat: (9*Cin, Cout).  eff_*: (B, Cout, 1).
    Returns (out (B, Cout, H*W), ss (B, Cout, 1)) with ss = mean(|out|, spatial)."""
    B, Cin, HW = x_flat.shape
    Cout = w_mat.shape[-1]
    assert HW == H * W

    add_residual = residual is not None
    kernel = functools.partial(_fused_conv_kernel, H=H, W=W,
                               add_residual=add_residual, apply_relu=apply_relu)

    in_specs = [
        pl.BlockSpec((1, Cin, HW), lambda b: (b, 0, 0)),       # activation
        pl.BlockSpec((9 * Cin, Cout), lambda b: (0, 0)),       # pre-flattened weights
        pl.BlockSpec((1, Cout, 1), lambda b: (b, 0, 0)),       # folded scale (per batch)
        pl.BlockSpec((1, Cout, 1), lambda b: (b, 0, 0)),       # folded bias (per batch)
    ]
    args = [x_flat, w_mat, eff_scale, eff_bias]
    if add_residual:
        in_specs.append(pl.BlockSpec((1, Cin, HW), lambda b: (b, 0, 0)))
        args.append(residual)

    out, ss = pl.pallas_call(
        kernel,
        grid=(B,),
        in_specs=in_specs,
        out_specs=(pl.BlockSpec((1, Cout, HW), lambda b: (b, 0, 0)),
                   pl.BlockSpec((1, Cout, 1), lambda b: (b, 0, 0))),
        out_shape=(jax.ShapeDtypeStruct((B, Cout, HW), jnp.float32),
                   jax.ShapeDtypeStruct((B, Cout, 1), jnp.float32)),
        scratch_shapes=[
            pltpu.VMEM((H + 2, W + 2, Cin), jnp.float32),      # halo-padded input
            pltpu.VMEM((HW, 9 * Cin), jnp.float32),            # im2col buffer
        ],
        compiler_params=pltpu.CompilerParams(
            dimension_semantics=("parallel",),
            vmem_limit_bytes=48 * 1024 * 1024),
    )(*args)
    return out, ss


# ----------------------------------------------------------------------------
# Gate MLP + bottom-k channel masking (tiny; plain JAX glue)
# TODO(synk): bottom-k gate masking + 10-unit gate MLP stay in plain JAX
#             (no Pallas top_k primitive); inputs are only (B, C) vectors.
# ----------------------------------------------------------------------------
def compute_gate(ss, w1, b1, w2, b2):
    h = jnp.maximum(ss @ w1.T + b1, 0.0)                           # (B, 10)
    g = 1.5 * jax.nn.sigmoid(h @ w2.T + b2)                        # (B, Cout)
    cout = g.shape[1]
    inactive = int(cout - round(cout * RATIO))
    if inactive > 0:
        _, idx = jax.lax.top_k(-g, inactive)                       # smallest gates
        drop = jnp.clip(jax.nn.one_hot(idx, cout, dtype=g.dtype).sum(axis=1), 0.0, 1.0)
        g = g * (1.0 - drop)
    return g


def fold_bn(conv_bias, gamma, beta, mean, var):
    scale = gamma / jnp.sqrt(var + BN_EPS)
    bias = (conv_bias - mean) * scale + beta
    return scale, bias


def _fold_gate(scale, bias, gate):
    # (conv*scale + bias) * gate == conv*(scale*gate) + bias*gate
    eff_scale = (scale[None, :] * gate)[..., None].astype(jnp.float32)   # (B, C, 1)
    eff_bias = (bias[None, :] * gate)[..., None].astype(jnp.float32)     # (B, C, 1)
    return eff_scale, eff_bias


# ----------------------------------------------------------------------------
# BasicBlock forward (NCHW in / NCHW out, no HBM transposes)
# ----------------------------------------------------------------------------
def basic_block_forward(x_nchw, p):
    B, Cin, H, W = x_nchw.shape
    x_flat = x_nchw.reshape(B, Cin, H * W)               # contiguous view, free

    # conv1_bn + block ReLU (fused); gate1 from mean(|x|) over spatial.
    ss0 = jnp.mean(jnp.abs(x_flat), axis=2)                               # (B, Cin)
    gate1 = compute_gate(ss0, p['g1_w1'], p['g1_b1'], p['g1_w2'], p['g1_b2'])
    s1, b1 = fold_bn(p['conv1_b'], p['bn1_gamma'], p['bn1_beta'],
                     p['bn1_mean'], p['bn1_var'])
    es1, eb1 = _fold_gate(s1, b1, gate1)
    w1_mat = p['conv1_w'].reshape(9 * Cin, -1)
    out1, ss1 = gated_conv_bn_pallas(x_flat, w1_mat, es1, eb1, H, W,
                                     residual=None, apply_relu=True)

    # conv2_bn + residual add + final ReLU (fused); gate2 from the fused mean output.
    planes = out1.shape[1]
    gate2 = compute_gate(ss1[..., 0], p['g2_w1'], p['g2_b1'], p['g2_w2'], p['g2_b2'])
    s2, b2 = fold_bn(p['conv2_b'], p['bn2_gamma'], p['bn2_beta'],
                     p['bn2_mean'], p['bn2_var'])
    es2, eb2 = _fold_gate(s2, b2, gate2)
    w2_mat = p['conv2_w'].reshape(9 * planes, -1)
    out2, _ = gated_conv_bn_pallas(out1, w2_mat, es2, eb2, H, W,
                                   residual=x_flat, apply_relu=True)

    return out2.reshape(B, planes, H, W)                 # NCHW, free reshape


# ----------------------------------------------------------------------------
# Deterministic parameter init (mirrors the module's __init__ shapes)
# ----------------------------------------------------------------------------
def init_params(key, inplanes, planes):
    ks = jax.random.split(key, 8)

    def conv_w(k, cin, cout):  # stored as HWIO
        return jax.random.normal(k, (3, 3, cin, cout), jnp.float32) * math.sqrt(2.0 / (9 * cin))

    def lin_w(k, cin, cout):   # weight.normal_(0, sqrt(2/in_features))
        return jax.random.normal(k, (cout, cin), jnp.float32) * math.sqrt(2.0 / cin)

    p = {}
    p['conv1_w'] = conv_w(ks[0], inplanes, planes)
    p['conv1_b'] = jax.random.uniform(ks[1], (planes,), jnp.float32, -0.1, 0.1)
    p['conv2_w'] = conv_w(ks[2], planes, planes)
    p['conv2_b'] = jax.random.uniform(ks[3], (planes,), jnp.float32, -0.1, 0.1)
    for i in (1, 2):
        p[f'bn{i}_gamma'] = jnp.ones((planes,), jnp.float32)
        p[f'bn{i}_beta'] = jnp.zeros((planes,), jnp.float32)
        p[f'bn{i}_mean'] = jnp.zeros((planes,), jnp.float32)
        p[f'bn{i}_var'] = jnp.ones((planes,), jnp.float32)
    p['g1_w1'] = lin_w(ks[4], inplanes, 10); p['g1_b1'] = jnp.zeros((10,), jnp.float32)
    p['g1_w2'] = lin_w(ks[5], 10, planes);   p['g1_b2'] = jnp.zeros((planes,), jnp.float32)
    p['g2_w1'] = lin_w(ks[6], planes, 10);   p['g2_b1'] = jnp.zeros((10,), jnp.float32)
    p['g2_w2'] = lin_w(ks[7], 10, planes);   p['g2_b2'] = jnp.zeros((planes,), jnp.float32)
    return p


# ----------------------------------------------------------------------------
# Pure-JAX reference (for correctness check)
# ----------------------------------------------------------------------------
def _ref_gated_conv_bn(x, w, cb, gamma, beta, mean, var, gate,
                       residual=None, apply_relu=True):
    y = jax.lax.conv_general_dilated(
        x, w, window_strides=(1, 1), padding=((1, 1), (1, 1)),
        dimension_numbers=('NHWC', 'HWIO', 'NHWC')) + cb
    y = (y - mean) / jnp.sqrt(var + BN_EPS) * gamma + beta
    y = y * gate[:, None, None, :]
    if residual is not None:
        y = y + residual
    if apply_relu:
        y = jnp.maximum(y, 0.0)
    return y


def ref_basic_block(x_nchw, p):
    x = jnp.transpose(x_nchw, (0, 2, 3, 1))
    residual = x
    ss0 = jnp.mean(jnp.abs(x), axis=(1, 2))
    gate1 = compute_gate(ss0, p['g1_w1'], p['g1_b1'], p['g1_w2'], p['g1_b2'])
    out = _ref_gated_conv_bn(x, p['conv1_w'], p['conv1_b'], p['bn1_gamma'],
                             p['bn1_beta'], p['bn1_mean'], p['bn1_var'], gate1)
    ss1 = jnp.mean(jnp.abs(out), axis=(1, 2))
    gate2 = compute_gate(ss1, p['g2_w1'], p['g2_b1'], p['g2_w2'], p['g2_b2'])
    out = _ref_gated_conv_bn(out, p['conv2_w'], p['conv2_b'], p['bn2_gamma'],
                             p['bn2_beta'], p['bn2_mean'], p['bn2_var'], gate2,
                             residual=residual)
    return jnp.transpose(out, (0, 3, 1, 2))


if __name__ == "__main__":
    key = jax.random.PRNGKey(0)
    B, C, H, W = 2, 4, 16, 16
    planes = 4

    k_x, k_p = jax.random.split(key)
    x = jax.random.normal(k_x, (B, C, H, W), jnp.float32)   # NCHW, like PyTorch
    params = init_params(k_p, C, planes)

    out = basic_block_forward(x, params)
    out = jax.block_until_ready(out)

    ref = ref_basic_block(x, params)
    assert out.shape == (B, planes, H, W), out.shape
    err = float(jnp.max(jnp.abs(out - ref)))
    assert err < 1e-3, f"mismatch vs reference: {err}"

    print("KERNEL_OK")
</pallas_src>

<mosaic_0001>
module attributes {stable_mosaic.version = 11 : i64} {
  func.func @_fused_conv_kernel(%arg0: i32, %arg1: memref<1x4x256xf32, #tpu.memory_space<vmem>>, %arg2: memref<36x4xf32, #tpu.memory_space<vmem>>, %arg3: memref<1x4x1xf32, #tpu.memory_space<vmem>>, %arg4: memref<1x4x1xf32, #tpu.memory_space<vmem>>, %arg5: memref<1x4x256xf32, #tpu.memory_space<vmem>>, %arg6: memref<1x4x1xf32, #tpu.memory_space<vmem>>, %arg7: memref<18x18x4xf32, #tpu.memory_space<vmem>>, %arg8: memref<256x36xf32, #tpu.memory_space<vmem>>) attributes {dimension_semantics = [#tpu.dimension_semantics<parallel>], iteration_bounds = array<i64: 2>, scalar_prefetch = 0 : i64, scratch_operands = 2 : i64, tpu.core_type = #tpu.core_type<tc>, window_params = [{transform_indices = @transform_0, window_bounds = array<i64: 1, 4, 256>}, {pipeline_mode = #tpu.pipeline_mode<synchronous>, transform_indices = @transform_1, window_bounds = array<i64: 36, 4>}, {transform_indices = @transform_2, window_bounds = array<i64: 1, 4, 1>}, {transform_indices = @transform_3, window_bounds = array<i64: 1, 4, 1>}, {transform_indices = @transform_4, window_bounds = array<i64: 1, 4, 256>}, {transform_indices = @transform_5, window_bounds = array<i64: 1, 4, 1>}]} {
    %c0 = arith.constant 0 : index
    %c0_0 = arith.constant 0 : index
    %c0_1 = arith.constant 0 : index
    %0 = vector.load %arg1[%c0, %c0_0, %c0_1] : memref<1x4x256xf32, #tpu.memory_space<vmem>>, vector<1x4x256xf32>
    %1 = vector.shape_cast %0 : vector<1x4x256xf32> to vector<4x256xf32>
    %2 = tpu.transpose %1, [1, 0] : vector<4x256xf32> -> vector<256x4xf32>
    %cst = arith.constant 0.000000e+00 : f32
    %3 = vector.broadcast %cst : f32 to vector<18x18x4xf32>
    %c0_2 = arith.constant 0 : index
    %c0_3 = arith.constant 0 : index
    %c0_4 = arith.constant 0 : index
    %4 = vector.load %arg7[%c0_2, %c0_3, %c0_4] : memref<18x18x4xf32, #tpu.memory_space<vmem>>, vector<18x18x4xf32>
    tpu.vector_store %arg7[%c0_2, %c0_3, %c0_4], %3 {strides = array<i32>} : memref<18x18x4xf32, #tpu.memory_space<vmem>>, vector<18x18x4xf32>,
    %5 = vector.shape_cast %2 : vector<256x4xf32> to vector<16x16x4xf32>
    %c1 = arith.constant 1 : index
    %c1_5 = arith.constant 1 : index
    %c0_6 = arith.constant 0 : index
    %6 = vector.load %arg7[%c1, %c1_5, %c0_6] : memref<18x18x4xf32, #tpu.memory_space<vmem>>, vector<16x16x4xf32>
    tpu.vector_store %arg7[%c1, %c1_5, %c0_6], %5 {strides = array<i32>} : memref<18x18x4xf32, #tpu.memory_space<vmem>>, vector<16x16x4xf32>,
    %c0_7 = arith.constant 0 : index
    %c0_8 = arith.constant 0 : index
    %c0_9 = arith.constant 0 : index
    %7 = vector.load %arg7[%c0_7, %c0_8, %c0_9] : memref<18x18x4xf32, #tpu.memory_space<vmem>>, vector<16x16x4xf32>
    %8 = vector.shape_cast %7 : vector<16x16x4xf32> to vector<256x4xf32>
    %c0_10 = arith.constant 0 : index
    %c0_11 = arith.constant 0 : index
    %9 = vector.load %arg8[%c0_10, %c0_11] : memref<256x36xf32, #tpu.memory_space<vmem>>, vector<256x4xf32>
    tpu.vector_store %arg8[%c0_10, %c0_11], %8 {strides = array<i32>} : memref<256x36xf32, #tpu.memory_space<vmem>>, vector<256x4xf32>,
    %c0_12 = arith.constant 0 : index
    %c1_13 = arith.constant 1 : index
    %c0_14 = arith.constant 0 : index
    %10 = vector.load %arg7[%c0_12, %c1_13, %c0_14] : memref<18x18x4xf32, #tpu.memory_space<vmem>>, vector<16x16x4xf32>
    %11 = vector.shape_cast %10 : vector<16x16x4xf32> to vector<256x4xf32>
    %c0_15 = arith.constant 0 : index
    %c4 = arith.constant 4 : index
    %12 = vector.load %arg8[%c0_15, %c4] : memref<256x36xf32, #tpu.memory_space<vmem>>, vector<256x4xf32>
    tpu.vector_store %arg8[%c0_15, %c4], %11 {strides = array<i32>} : memref<256x36xf32, #tpu.memory_space<vmem>>, vector<256x4xf32>,
    %c0_16 = arith.constant 0 : index
    %c2 = arith.constant 2 : index
    %c0_17 = arith.constant 0 : index
    %13 = vector.load %arg7[%c0_16, %c2, %c0_17] : memref<18x18x4xf32, #tpu.memory_space<vmem>>, vector<16x16x4xf32>
    %14 = vector.shape_cast %13 : vector<16x16x4xf32> to vector<256x4xf32>
    %c0_18 = arith.constant 0 : index
    %c8 = arith.constant 8 : index
    %15 = vector.load %arg8[%c0_18, %c8] : memref<256x36xf32, #tpu.memory_space<vmem>>, vector<256x4xf32>
    tpu.vector_store %arg8[%c0_18, %c8], %14 {strides = array<i32>} : memref<256x36xf32, #tpu.memory_space<vmem>>, vector<256x4xf32>,
    %c1_19 = arith.constant 1 : index
    %c0_20 = arith.constant 0 : index
    %c0_21 = arith.constant 0 : index
    %16 = vector.load %arg7[%c1_19, %c0_20, %c0_21] : memref<18x18x4xf32, #tpu.memory_space<vmem>>, vector<16x16x4xf32>
    %17 = vector.shape_cast %16 : vector<16x16x4xf32> to vector<256x4xf32>
    %c0_22 = arith.constant 0 : index
    %c12 = arith.constant 12 : index
    %18 = vector.load %arg8[%c0_22, %c12] : memref<256x36xf32, #tpu.memory_space<vmem>>, vector<256x4xf32>
    tpu.vector_store %arg8[%c0_22, %c12], %17 {strides = array<i32>} : memref<256x36xf32, #tpu.memory_space<vmem>>, vector<256x4xf32>,
    %c1_23 = arith.constant 1 : index
    %c1_24 = arith.constant 1 : index
    %c0_25 = arith.constant 0 : index
    %19 = vector.load %arg7[%c1_23, %c1_24, %c0_25] : memref<18x18x4xf32, #tpu.memory_space<vmem>>, vector<16x16x4xf32>
    %20 = vector.shape_cast %19 : vector<16x16x4xf32> to vector<256x4xf32>
    %c0_26 = arith.constant 0 : index
    %c16 = arith.constant 16 : index
    %21 = vector.load %arg8[%c0_26, %c16] : memref<256x36xf32, #tpu.memory_space<vmem>>, vector<256x4xf32>
    tpu.vector_store %arg8[%c0_26, %c16], %20 {strides = array<i32>} : memref<256x36xf32, #tpu.memory_space<vmem>>, vector<256x4xf32>,
    %c1_27 = arith.constant 1 : index
    %c2_28 = arith.constant 2 : index
    %c0_29 = arith.constant 0 : index
    %22 = vector.load %arg7[%c1_27, %c2_28, %c0_29] : memref<18x18x4xf32, #tpu.memory_space<vmem>>, vector<16x16x4xf32>
    %23 = vector.shape_cast %22 : vector<16x16x4xf32> to vector<256x4xf32>
    %c0_30 = arith.constant 0 : index
    %c20 = arith.constant 20 : index
    %24 = vector.load %arg8[%c0_30, %c20] : memref<256x36xf32, #tpu.memory_space<vmem>>, vector<256x4xf32>
    tpu.vector_store %arg8[%c0_30, %c20], %23 {strides = array<i32>} : memref<256x36xf32, #tpu.memory_space<vmem>>, vector<256x4xf32>,
    %c2_31 = arith.constant 2 : index
    %c0_32 = arith.constant 0 : index
    %c0_33 = arith.constant 0 : index
    %25 = vector.load %arg7[%c2_31, %c0_32, %c0_33] : memref<18x18x4xf32, #tpu.memory_space<vmem>>, vector<16x16x4xf32>
    %26 = vector.shape_cast %25 : vector<16x16x4xf32> to vector<256x4xf32>
    %c0_34 = arith.constant 0 : index
    %c24 = arith.constant 24 : index
    %27 = vector.load %arg8[%c0_34, %c24] : memref<256x36xf32, #tpu.memory_space<vmem>>, vector<256x4xf32>
    tpu.vector_store %arg8[%c0_34, %c24], %26 {strides = array<i32>} : memref<256x36xf32, #tpu.memory_space<vmem>>, vector<256x4xf32>,
    %c2_35 = arith.constant 2 : index
    %c1_36 = arith.constant 1 : index
    %c0_37 = arith.constant 0 : index
    %28 = vector.load %arg7[%c2_35, %c1_36, %c0_37] : memref<18x18x4xf32, #tpu.memory_space<vmem>>, vector<16x16x4xf32>
    %29 = vector.shape_cast %28 : vector<16x16x4xf32> to vector<256x4xf32>
    %c0_38 = arith.constant 0 : index
    %c28 = arith.constant 28 : index
    %30 = vector.load %arg8[%c0_38, %c28] : memref<256x36xf32, #tpu.memory_space<vmem>>, vector<256x4xf32>
    tpu.vector_store %arg8[%c0_38, %c28], %29 {strides = array<i32>} : memref<256x36xf32, #tpu.memory_space<vmem>>, vector<256x4xf32>,
    %c2_39 = arith.constant 2 : index
    %c2_40 = arith.constant 2 : index
    %c0_41 = arith.constant 0 : index
    %31 = vector.load %arg7[%c2_39, %c2_40, %c0_41] : memref<18x18x4xf32, #tpu.memory_space<vmem>>, vector<16x16x4xf32>
    %32 = vector.shape_cast %31 : vector<16x16x4xf32> to vector<256x4xf32>
    %c0_42 = arith.constant 0 : index
    %c32 = arith.constant 32 : index
    %33 = vector.load %arg8[%c0_42, %c32] : memref<256x36xf32, #tpu.memory_space<vmem>>, vector<256x4xf32>
    tpu.vector_store %arg8[%c0_42, %c32], %32 {strides = array<i32>} : memref<256x36xf32, #tpu.memory_space<vmem>>, vector<256x4xf32>,
    %c0_43 = arith.constant 0 : index
    %c0_44 = arith.constant 0 : index
    %34 = vector.load %arg8[%c0_43, %c0_44] : memref<256x36xf32, #tpu.memory_space<vmem>>, vector<256x36xf32>
    %c0_45 = arith.constant 0 : index
    %c0_46 = arith.constant 0 : index
    %35 = vector.load %arg2[%c0_45, %c0_46] : memref<36x4xf32, #tpu.memory_space<vmem>>, vector<36x4xf32>
    %cst_47 = arith.constant dense<0.000000e+00> : vector<256x4xf32>
    %36 = tpu.matmul %34, %35, %cst_47 {dimension_numbers = #tpu.dot_dimension_numbers<[1], [0], [0], [1], [0, 0, 1, 1], [], []>} : vector<256x36xf32>, vector<36x4xf32>, vector<256x4xf32> -> vector<256x4xf32>
    %37 = tpu.transpose %36, [1, 0] : vector<256x4xf32> -> vector<4x256xf32>
    %c0_48 = arith.constant 0 : index
    %c0_49 = arith.constant 0 : index
    %c0_50 = arith.constant 0 : index
    %38 = vector.load %arg3[%c0_48, %c0_49, %c0_50] : memref<1x4x1xf32, #tpu.memory_space<vmem>>, vector<1x4x1xf32>
    %39 = vector.shape_cast %38 : vector<1x4x1xf32> to vector<4x1xf32>
    %40 = vector.broadcast %39 : vector<4x1xf32> to vector<4x256xf32>
    %41 = arith.mulf %37, %40 : vector<4x256xf32>
    %c0_51 = arith.constant 0 : index
    %c0_52 = arith.constant 0 : index
    %c0_53 = arith.constant 0 : index
    %42 = vector.load %arg4[%c0_51, %c0_52, %c0_53] : memref<1x4x1xf32, #tpu.memory_space<vmem>>, vector<1x4x1xf32>
    %43 = vector.shape_cast %42 : vector<1x4x1xf32> to vector<4x1xf32>
    %44 = vector.broadcast %43 : vector<4x1xf32> to vector<4x256xf32>
    %45 = arith.addf %41, %44 : vector<4x256xf32>
    %cst_54 = arith.constant 0.000000e+00 : f32
    %46 = vector.broadcast %cst_54 : f32 to vector<4x256xf32>
    %47 = arith.maximumf %45, %46 : vector<4x256xf32>
    %c0_55 = arith.constant 0 : index
    %c0_56 = arith.constant 0 : index
    %c0_57 = arith.constant 0 : index
    %48 = vector.load %arg5[%c0_55, %c0_56, %c0_57] : memref<1x4x256xf32, #tpu.memory_space<vmem>>, vector<1x4x256xf32>
    %49 = vector.shape_cast %48 : vector<1x4x256xf32> to vector<4x256xf32>
    %50 = vector.shape_cast %47 : vector<4x256xf32> to vector<1x4x256xf32>
    tpu.vector_store %arg5[%c0_55, %c0_56, %c0_57], %50 {strides = array<i32>} : memref<1x4x256xf32, #tpu.memory_space<vmem>>, vector<1x4x256xf32>,
    %51 = math.absf %47 : vector<4x256xf32>
    %cst_58 = arith.constant dense<0.000000e+00> : vector<4xf32>
    %52 = vector.multi_reduction <add>, %51, %cst_58 [1] : vector<4x256xf32> to vector<4xf32>
    %53 = vector.shape_cast %52 : vector<4xf32> to vector<4x1xf32>
    %cst_59 = arith.constant 2.560000e+02 : f32
    %54 = vector.broadcast %cst_59 : f32 to vector<4x1xf32>
    %55 = arith.divf %53, %54 : vector<4x1xf32>
    %c0_60 = arith.constant 0 : index
    %c0_61 = arith.constant 0 : index
    %c0_62 = arith.constant 0 : index
    %56 = vector.load %arg6[%c0_60, %c0_61, %c0_62] : memref<1x4x1xf32, #tpu.memory_space<vmem>>, vector<1x4x1xf32>
    %57 = vector.shape_cast %56 : vector<1x4x1xf32> to vector<4x1xf32>
    %58 = vector.shape_cast %55 : vector<4x1xf32> to vector<1x4x1xf32>
    tpu.vector_store %arg6[%c0_60, %c0_61, %c0_62], %58 {strides = array<i32>} : memref<1x4x1xf32, #tpu.memory_space<vmem>>, vector<1x4x1xf32>,
    return
  }
  func.func @transform_0(%arg0: i32) -> (i32, i32, i32) {
    %c0_i32 = arith.constant 0 : i32
    %c0_i32_0 = arith.constant 0 : i32
    %c0_i32_1 = arith.constant 0 : i32
    return %arg0, %c0_i32, %c0_i32_0 : i32, i32, i32
  }
  func.func @transform_1(%arg0: i32) -> (i32, i32) {
    %c0_i32 = arith.constant 0 : i32
    %c0_i32_0 = arith.constant 0 : i32
    %c0_i32_1 = arith.constant 0 : i32
    return %c0_i32, %c0_i32_0 : i32, i32
  }
  func.func @transform_2(%arg0: i32) -> (i32, i32, i32) {
    %c0_i32 = arith.constant 0 : i32
    %c0_i32_0 = arith.constant 0 : i32
    %c0_i32_1 = arith.constant 0 : i32
    return %arg0, %c0_i32, %c0_i32_0 : i32, i32, i32
  }
  func.func @transform_3(%arg0: i32) -> (i32, i32, i32) {
    %c0_i32 = arith.constant 0 : i32
    %c0_i32_0 = arith.constant 0 : i32
    %c0_i32_1 = arith.constant 0 : i32
    return %arg0, %c0_i32, %c0_i32_0 : i32, i32, i32
  }
  func.func @transform_4(%arg0: i32) -> (i32, i32, i32) {
    %c0_i32 = arith.constant 0 : i32
    %c0_i32_0 = arith.constant 0 : i32
    %c0_i32_1 = arith.constant 0 : i32
    return %arg0, %c0_i32, %c0_i32_0 : i32, i32, i32
  }
  func.func @transform_5(%arg0: i32) -> (i32, i32, i32) {
    %c0_i32 = arith.constant 0 : i32
    %c0_i32_0 = arith.constant 0 : i32
    %c0_i32_1 = arith.constant 0 : i32
    return %arg0, %c0_i32, %c0_i32_0 : i32, i32, i32
  }
}

</mosaic_0001>

<llo_original>
// kernel: tpu_custom_call.1
$region0: #{tpu_custom_call.1}
  #allocation0 [shape = 'u32[]', space=smem, size = 0x4, offset = 0x4, fixed_abs, tag = 'smem constant byte address 0x4 - core index']
  #allocation1 [shape = 'u32[144,128]{1,0:T(1,128)}', space=vmem, size = 0x12000, scoped, tag = 'internal scratch']
  #allocation2 [shape = 'f32[18,18,4]{2,1,0:T(8,128)}', space=vmem, size = 0x36000, scoped, tag = 'scratch operand']
  #allocation3 [shape = 'f32[256,36]{1,0:T(8,128)}', space=vmem, size = 0x20000, scoped, tag = 'scratch operand']
  %s0 = inlined_call_operand.vmem [shape: f32[2,4,256], index: 0, kind: input, shape index: {}]
  %s1 = inlined_call_operand.vmem [shape: f32[36,4], index: 1, kind: input, shape index: {}]
  %s2 = inlined_call_operand.vmem [shape: f32[2,4,1], index: 2, kind: input, shape index: {}]
  %s3 = inlined_call_operand.vmem [shape: f32[2,4,1], index: 3, kind: input, shape index: {}]
  %s4 = inlined_call_operand.hbm [shape: f32[2,4,256], index: 4, kind: output, shape index: {0}]
  %s5 = inlined_call_operand.vmem [shape: f32[2,4,1], index: 5, kind: output, shape index: {1}]
  %6 = xla_tuple %s4, %s5
  %s7 = sld [smem:[#allocation0]]
  $region57: #{tpu_custom_call.1} parent=0
    _
  %s9 = ssub.s32 1, %s7
  %s10 = scalar_select 0, %s9, %s7
  $region1: #{tpu_custom_call.1} parent=0
    #allocation4 [shape = 'u8[8192]{0}', space=vmem, size = 0x2000, scoped, tag = 'output window, operand 0']
    #allocation5 [shape = 's32[2]{0}', space=sflag, size = 0x8, scoped, tag = 'scoped memory for tpu_custom_call.1']
    %11 = vsyncpa [#allocation5], 0
    %s12 = scalar_lea.sflag [#allocation5], 1
    %13 = vsyncpa %s12, 0
    loop: start=0, step=1, limit=4
    $region2: #{tpu_custom_call.1} parent=1 // loop_pre_header
      _
    $region3: #{tpu_custom_call.1} parent=1 // loop_header
      %s15 = sphi 0, %s19
      %p16 = scmp.ge.s32.totalorder %s15, 4
      %s25 = sphi 0, %s27
      %s28 = sphi 0, %s25
      %s29 = sphi 0, %s28
      %s45 = sphi 0, %s29
      %s49 = sphi 0, %s49
      %s51 = sphi 0, %s49
      %s52 = sphi 0, %s51
      %s66 = sphi 0, %s52
      %s72 = sphi 0, %s74
      %s75 = sphi 0, %s72
      %s76 = sphi 0, %s75
      %s92 = sphi 0, %s76
      %s98 = sphi 0, %s100
      %s101 = sphi 0, %s98
      %s102 = sphi 0, %s101
      %s118 = sphi 0, %s102
      %s124 = sphi 0, %s126
      %s127 = sphi 0, %s124
      %s128 = sphi 0, %s127
      %s144 = sphi 0, %s128
      %s150 = sphi 0, %s152
      %s153 = sphi 0, %s150
      %s154 = sphi 0, %s153
      %s170 = sphi 0, %s154
    $region4: #{tpu_custom_call.1} parent=1 // loop_header_branch
      %18 = sbr.rel (%p16) target = $region8
    $region5: #{tpu_custom_call.1} parent=1 // loop_body
      %s20 = ssub.s32 %s15, 1
      %s21 = ssub.s32 %s15, 2
      %s22 = sadd.s32 %s15, 1
      %s23 = ssub.s32 %s15, %s22
      %p24 = scmp.eq.s32.totalorder %s23, 0
      %s26 = sadd.s32 %s25, 1
      %s27 = scalar_select %p24, %s25, %s26
      %p30 = pneg %p24
      %p31 = scmp.eq.s32.totalorder %s15, 1
      %p32 = por %p30, %p31
      %p33 = scmp.ne.s32.totalorder %s25, %s28
      %p34 = scmp.eq.s32.totalorder %s15, 0
      %p35 = por %p33, %p34
      %p36 = scmp.ne.s32.totalorder %s25, %s28
      %p37 = scmp.eq.s32.totalorder %s20, 1
      %p38 = por %p36, %p37
      %p39 = scmp.ne.s32.totalorder %s28, %s29
      %p40 = scmp.eq.s32.totalorder %s20, 0
      %p41 = por %p39, %p40
      %p42 = scmp.ne.s32.totalorder %s28, %s29
      %p43 = scmp.eq.s32.totalorder %s21, 1
      %p44 = por %p42, %p43
      %p46 = scmp.ne.s32.totalorder %s29, %s45
      %p47 = scmp.eq.s32.totalorder %s21, 0
      %p48 = por %p46, %p47
      %s50 = sadd.s32 %s49, 1
      %p53 = scmp.eq.s32.totalorder %s15, 1
      %p54 = scmp.ne.s32.totalorder %s49, %s51
      %p55 = scmp.eq.s32.totalorder %s15, 0
      %p56 = por %p54, %p55
      %p57 = scmp.ne.s32.totalorder %s49, %s51
      %p58 = scmp.eq.s32.totalorder %s20, 1
      %p59 = por %p57, %p58
      %p60 = scmp.ne.s32.totalorder %s51, %s52
      %p61 = scmp.eq.s32.totalorder %s20, 0
      %p62 = por %p60, %p61
      %p63 = scmp.ne.s32.totalorder %s51, %s52
      %p64 = scmp.eq.s32.totalorder %s21, 1
      %p65 = por %p63, %p64
      %p67 = scmp.ne.s32.totalorder %s52, %s66
      %p68 = scmp.eq.s32.totalorder %s21, 0
      %p69 = por %p67, %p68
      %s70 = ssub.s32 %s15, %s22
      %p71 = scmp.eq.s32.totalorder %s70, 0
      %s73 = sadd.s32 %s72, 1
      %s74 = scalar_select %p71, %s72, %s73
      %p77 = pneg %p71
      %p78 = scmp.eq.s32.totalorder %s15, 1
      %p79 = por %p77, %p78
      %p80 = scmp.ne.s32.totalorder %s72, %s75
      %p81 = scmp.eq.s32.totalorder %s15, 0
      %p82 = por %p80, %p81
      %p83 = scmp.ne.s32.totalorder %s72, %s75
      %p84 = scmp.eq.s32.totalorder %s20, 1
      %p85 = por %p83, %p84
      %p86 = scmp.ne.s32.totalorder %s75, %s76
      %p87 = scmp.eq.s32.totalorder %s20, 0
      %p88 = por %p86, %p87
      %p89 = scmp.ne.s32.totalorder %s75, %s76
      %p90 = scmp.eq.s32.totalorder %s21, 1
      %p91 = por %p89, %p90
      %p93 = scmp.ne.s32.totalorder %s76, %s92
      %p94 = scmp.eq.s32.totalorder %s21, 0
      %p95 = por %p93, %p94
      %s96 = ssub.s32 %s15, %s22
      %p97 = scmp.eq.s32.totalorder %s96, 0
      %s99 = sadd.s32 %s98, 1
      %s100 = scalar_select %p97, %s98, %s99
      %p103 = pneg %p97
      %p104 = scmp.eq.s32.totalorder %s15, 1
      %p105 = por %p103, %p104
      %p106 = scmp.ne.s32.totalorder %s98, %s101
      %p107 = scmp.eq.s32.totalorder %s15, 0
      %p108 = por %p106, %p107
      %p109 = scmp.ne.s32.totalorder %s98, %s101
      %p110 = scmp.eq.s32.totalorder %s20, 1
      %p111 = por %p109, %p110
      %p112 = scmp.ne.s32.totalorder %s101, %s102
      %p113 = scmp.eq.s32.totalorder %s20, 0
      %p114 = por %p112, %p113
      %p115 = scmp.ne.s32.totalorder %s101, %s102
      %p116 = scmp.eq.s32.totalorder %s21, 1
      %p117 = por %p115, %p116
      %p119 = scmp.ne.s32.totalorder %s102, %s118
      %p120 = scmp.eq.s32.totalorder %s21, 0
      %p121 = por %p119, %p120
      %s122 = ssub.s32 %s15, %s22
      %p123 = scmp.eq.s32.totalorder %s122, 0
      %s125 = sadd.s32 %s124, 1
      %s126 = scalar_select %p123, %s124, %s125
      %p129 = pneg %p123
      %p130 = scmp.eq.s32.totalorder %s15, 1
      %p131 = por %p129, %p130
      %p132 = scmp.ne.s32.totalorder %s124, %s127
      %p133 = scmp.eq.s32.totalorder %s15, 0
      %p134 = por %p132, %p133
      %p135 = scmp.ne.s32.totalorder %s124, %s127
      %p136 = scmp.eq.s32.totalorder %s20, 1
      %p137 = por %p135, %p136
      %p138 = scmp.ne.s32.totalorder %s127, %s128
      %p139 = scmp.eq.s32.totalorder %s20, 0
      %p140 = por %p138, %p139
      %p141 = scmp.ne.s32.totalorder %s127, %s128
      %p142 = scmp.eq.s32.totalorder %s21, 1
      %p143 = por %p141, %p142
      %p145 = scmp.ne.s32.totalorder %s128, %s144
      %p146 = scmp.eq.s32.totalorder %s21, 0
      %p147 = por %p145, %p146
      %s148 = ssub.s32 %s15, %s22
      %p149 = scmp.eq.s32.totalorder %s148, 0
      %s151 = sadd.s32 %s150, 1
      %s152 = scalar_select %p149, %s150, %s151
      %p155 = pneg %p149
      %p156 = scmp.eq.s32.totalorder %s15, 1
      %p157 = por %p155, %p156
      %p158 = scmp.ne.s32.totalorder %s150, %s153
      %p159 = scmp.eq.s32.totalorder %s15, 0
      %p160 = por %p158, %p159
      %p161 = scmp.ne.s32.totalorder %s150, %s153
      %p162 = scmp.eq.s32.totalorder %s20, 1
      %p163 = por %p161, %p162
      %p164 = scmp.ne.s32.totalorder %s153, %s154
      %p165 = scmp.eq.s32.totalorder %s20, 0
      %p166 = por %p164, %p165
      %p167 = scmp.ne.s32.totalorder %s153, %s154
      %p168 = scmp.eq.s32.totalorder %s21, 1
      %p169 = por %p167, %p168
      %p171 = scmp.ne.s32.totalorder %s154, %s170
      %p172 = scmp.eq.s32.totalorder %s21, 0
      %p173 = por %p171, %p172
      %p174 = scmp.le.s32.totalorder 1, %s15
      %p175 = scmp.lt.s32.totalorder %s15, 3
      %p176 = pnand %p174, %p175
      %p177 = pneg %p176
      // Predicated region
      $region9: #{tpu_custom_call.1} parent=5 // pred_check
        _
      $region10: #{tpu_custom_call.1} parent=5 // pred_check_branch
        %179 = sbr.rel (%p176) target = $region12
      $region11: #{tpu_custom_call.1} parent=5 // pred_region
        %s180 = ssub.s32 %s15, 1
        // Predicated region
        $region13: #{tpu_custom_call.1} parent=11 // pred_check
          %p181 = pneg %p62
        $region14: #{tpu_custom_call.1} parent=11 // pred_check_branch
          %183 = sbr.rel (%p181) target = $region16
        $region15: #{tpu_custom_call.1} parent=11 // pred_region
          _
        $region16: #{tpu_custom_call.1} parent=11 // pred_fallthru
          _
      $region12: #{tpu_custom_call.1} parent=5 // pred_fallthru
        _
      %p184 = scmp.lt.s32.totalorder %s15, 2
      // Predicated region
      $region17: #{tpu_custom_call.1} parent=5 // pred_check
        %p185 = pneg %p184
      $region18: #{tpu_custom_call.1} parent=5 // pred_check_branch
        %187 = sbr.rel (%p185) target = $region20
      $region19: #{tpu_custom_call.1} parent=5 // pred_region
        // Predicated region
        $region21: #{tpu_custom_call.1} parent=19 // pred_check
          %p188 = pneg %p35
        $region22: #{tpu_custom_call.1} parent=19 // pred_check_branch
          %190 = sbr.rel (%p188) target = $region24
        $region23: #{tpu_custom_call.1} parent=19 // pred_region
          %p191 = scmp.lt.s32.totalorder %s15, 1
          %s192 = scalar_select %p191, %s15, 1
          %s193 = smul.addr %s192, 2
          %s194 = smul.addr %s193, 4
          %s195 = scalar_lea.vmem %s0, %s194
        $region24: #{tpu_custom_call.1} parent=19 // pred_fallthru
          _
        // Predicated region
        $region25: #{tpu_custom_call.1} parent=19 // pred_check
          %p196 = pneg %p82
        $region26: #{tpu_custom_call.1} parent=19 // pred_check_branch
          %198 = sbr.rel (%p196) target = $region28
        $region27: #{tpu_custom_call.1} parent=19 // pred_region
          %p199 = scmp.lt.s32.totalorder %s15, 1
          %s200 = scalar_select %p199, %s15, 1
          %s201 = smul.addr %s200, 4
          %s202 = scalar_lea.vmem %s2, %s201
        $region28: #{tpu_custom_call.1} parent=19 // pred_fallthru
          _
        // Predicated region
        $region29: #{tpu_custom_call.1} parent=19 // pred_check
          %p203 = pneg %p108
        $region30: #{tpu_custom_call.1} parent=19 // pred_check_branch
          %205 = sbr.rel (%p203) target = $region32
        $region31: #{tpu_custom_call.1} parent=19 // pred_region
          %p206 = scmp.lt.s32.totalorder %s15, 1
          %s207 = scalar_select %p206, %s15, 1
          %s208 = smul.addr %s207, 4
          %s209 = scalar_lea.vmem %s3, %s208
        $region32: #{tpu_custom_call.1} parent=19 // pred_fallthru
          _
      $region20: #{tpu_custom_call.1} parent=5 // pred_fallthru
        _
      %p210 = scmp.le.s32.totalorder 1, %s15
      %p211 = scmp.lt.s32.totalorder %s15, 3
      %p212 = pnand %p210, %p211
      %p213 = pneg %p212
      // Predicated region
      $region33: #{tpu_custom_call.1} parent=5 // pred_check
        _
      $region34: #{tpu_custom_call.1} parent=5 // pred_check_branch
        %215 = sbr.rel (%p212) target = $region36
      $region35: #{tpu_custom_call.1} parent=5 // pred_region
        %s216 = ssub.s32 %s15, 1
        %p217 = scmp.lt.s32.totalorder %s20, 1
        %s218 = scalar_select %p217, %s20, 1
        %s219 = smul.addr %s218, 2
        %s220 = smul.addr %s219, 4
        %s221 = scalar_lea.vmem %s0, %s220
        %p222 = pneg %p41
        %p223 = pneg %p38
        %p224 = pneg %p62
        %p225 = pneg %p59
        %p226 = scmp.lt.s32.totalorder %s20, 1
        %s227 = scalar_select %p226, %s20, 1
        %s228 = smul.addr %s227, 4
        %s229 = scalar_lea.vmem %s2, %s228
        %p230 = pneg %p88
        %p231 = pneg %p85
        %p232 = scmp.lt.s32.totalorder %s20, 1
        %s233 = scalar_select %p232, %s20, 1
        %s234 = smul.addr %s233, 4
        %s235 = scalar_lea.vmem %s3, %s234
        %p236 = pneg %p114
        %p237 = pneg %p111
        %p238 = pneg %p140
        %p239 = pneg %p137
        %s240 = sand.u32 %s127, 1
        %s241 = scalar_lea.sflag [#allocation5], %s240
        %s242 = sand.u32 %s127, 1
        %s243 = smul.addr %s242, 8
        %s244 = scalar_lea.vmem [#allocation4], %s243
        %p245 = pneg %p166
        %p246 = pneg %p163
        %p247 = scmp.lt.s32.totalorder %s20, 1
        %s248 = scalar_select %p247, %s20, 1
        %s249 = smul.addr %s248, 4
        %s250 = scalar_lea.vmem %s5, %s249
        %p251 = scmp.lt.s32.totalorder %s20, 1
        %s252 = scalar_select %p251, %s20, 1
        %s253 = smul.addr %s252, 2
        %s254 = smul.addr %s253, 4
        %s255 = scalar_lea.vmem %s0, %s254
        %p256 = scmp.lt.s32.totalorder %s20, 1
        %s257 = scalar_select %p256, %s20, 1
        %s258 = smul.addr %s257, 4
        %s259 = scalar_lea.vmem %s2, %s258
        %p260 = scmp.lt.s32.totalorder %s20, 1
        %s261 = scalar_select %p260, %s20, 1
        %s262 = smul.addr %s261, 4
        %s263 = scalar_lea.vmem %s3, %s262
        %p264 = scmp.lt.s32.totalorder %s20, 1
        %s265 = scalar_select %p264, %s20, 1
        %s266 = smul.addr %s265, 4
        %s267 = scalar_lea.vmem %s5, %s266
        %v268 = vld [vmem:[%s255] sm:$0xff]
        %v270 = vcombine.high %v268, %v268
        %272 = vxpose.xlu0.b32.start [1/16] %v268, 128
        %273 = vxpose.xlu0.b32.cont [2/16] 0.0, 128
        %274 = vxpose.xlu0.b32.cont [3/16] 0.0, 128
        %275 = vxpose.xlu0.b32.cont [4/16] 0.0, 128
        %276 = vxpose.xlu0.b32.cont [5/16] 0.0, 128
        %277 = vxpose.xlu0.b32.cont [6/16] 0.0, 128
        %278 = vxpose.xlu0.b32.cont [7/16] 0.0, 128
        %279 = vxpose.xlu0.b32.cont [8/16] 0.0, 128
        %280 = vxpose.xlu0.b32.cont [9/16] 0.0, 128
        %281 = vxpose.xlu0.b32.cont [10/16] 0.0, 128
        %282 = vxpose.xlu0.b32.cont [11/16] 0.0, 128
        %283 = vxpose.xlu0.b32.cont [12/16] 0.0, 128
        %284 = vxpose.xlu0.b32.cont [13/16] 0.0, 128
        %285 = vxpose.xlu0.b32.cont [14/16] 0.0, 128
        %286 = vxpose.xlu0.b32.cont [15/16] 0.0, 128
        %287 = vxpose.xlu0.b32.end [16/16] 0.0, 128
        %v288 = vpop.trf.xlu0
        %v289 = vpop.trf.xlu0
        %v290 = vpop.trf.xlu0
        %v291 = vpop.trf.xlu0
        %v292 = vpop.trf.xlu0
        %v293 = vpop.trf.xlu0
        %v294 = vpop.trf.xlu0
        %v295 = vpop.trf.xlu0
        %v296 = vpop.trf.xlu0
        %v297 = vpop.trf.xlu0
        %v298 = vpop.trf.xlu0
        %v299 = vpop.trf.xlu0
        %v300 = vpop.trf.xlu0
        %v301 = vpop.trf.xlu0
        %v302 = vpop.trf.xlu0
        %v303 = vpop.trf.xlu0
        %304 = vxpose.xlu0.b32.start [1/16] %v270, 128
        %305 = vxpose.xlu0.b32.cont [2/16] 0.0, 128
        %306 = vxpose.xlu0.b32.cont [3/16] 0.0, 128
        %307 = vxpose.xlu0.b32.cont [4/16] 0.0, 128
        %308 = vxpose.xlu0.b32.cont [5/16] 0.0, 128
        %309 = vxpose.xlu0.b32.cont [6/16] 0.0, 128
        %310 = vxpose.xlu0.b32.cont [7/16] 0.0, 128
        %311 = vxpose.xlu0.b32.cont [8/16] 0.0, 128
        %312 = vxpose.xlu0.b32.cont [9/16] 0.0, 128
        %313 = vxpose.xlu0.b32.cont [10/16] 0.0, 128
        %314 = vxpose.xlu0.b32.cont [11/16] 0.0, 128
        %315 = vxpose.xlu0.b32.cont [12/16] 0.0, 128
        %316 = vxpose.xlu0.b32.cont [13/16] 0.0, 128
        %317 = vxpose.xlu0.b32.cont [14/16] 0.0, 128
        %318 = vxpose.xlu0.b32.cont [15/16] 0.0, 128
        %319 = vxpose.xlu0.b32.end [16/16] 0.0, 128
        %v320 = vpop.trf.xlu0
        %v321 = vpop.trf.xlu0
        %v322 = vpop.trf.xlu0
        %v323 = vpop.trf.xlu0
        %v324 = vpop.trf.xlu0
        %v325 = vpop.trf.xlu0
        %v326 = vpop.trf.xlu0
        %v327 = vpop.trf.xlu0
        %v328 = vpop.trf.xlu0
        %v329 = vpop.trf.xlu0
        %v330 = vpop.trf.xlu0
        %v331 = vpop.trf.xlu0
        %v332 = vpop.trf.xlu0
        %v333 = vpop.trf.xlu0
        %v334 = vpop.trf.xlu0
        %v335 = vpop.trf.xlu0
        %vm336 = vcmask 31744
        %337 = vst.msk [vmem:[#allocation2] sm:$0xff] %vm336, 0.0
        %338 = vst.msk [vmem:[#allocation2 + $0x8] sm:$0xff] %vm336, 0.0
        %vm339 = vcmask 25600
        %340 = vst.msk [vmem:[#allocation2 + $0x10] sm:$0x3] %vm339, 0.0
        %341 = vst.msk [vmem:[#allocation2 + $0x18] sm:$0xff] %vm336, 0.0
        %342 = vst.msk [vmem:[#allocation2 + $0x20] sm:$0xff] %vm336, 0.0
        %343 = vst.msk [vmem:[#allocation2 + $0x28] sm:$0x3] %vm339, 0.0
        %344 = vst.msk [vmem:[#allocation2 + $0x30] sm:$0xff] %vm336, 0.0
        %345 = vst.msk [vmem:[#allocation2 + $0x38] sm:$0xff] %vm336, 0.0
        %346 = vst.msk [vmem:[#allocation2 + $0x40] sm:$0x3] %vm339, 0.0
        %347 = vst.msk [vmem:[#allocation2 + $0x48] sm:$0xff] %vm336, 0.0
        %348 = vst.msk [vmem:[#allocation2 + $0x50] sm:$0xff] %vm336, 0.0
        %349 = vst.msk [vmem:[#allocation2 + $0x58] sm:$0x3] %vm339, 0.0
        %350 = vst.msk [vmem:[#allocation2 + $0x60] sm:$0xff] %vm336, 0.0
        %351 = vst.msk [vmem:[#allocation2 + $0x68] sm:$0xff] %vm336, 0.0
        %352 = vst.msk [vmem:[#allocation2 + $0x70] sm:$0x3] %vm339, 0.0
        %353 = vst.msk [vmem:[#allocation2 + $0x78] sm:$0xff] %vm336, 0.0
        %354 = vst.msk [vmem:[#allocation2 + $0x80] sm:$0xff] %vm336, 0.0
        %355 = vst.msk [vmem:[#allocation2 + $0x88] sm:$0x3] %vm339, 0.0
        %356 = vst.msk [vmem:[#allocation2 + $0x90] sm:$0xff] %vm336, 0.0
        %357 = vst.msk [vmem:[#allocation2 + $0x98] sm:$0xff] %vm336, 0.0
        %358 = vst.msk [vmem:[#allocation2 + $0xa0] sm:$0x3] %vm339, 0.0
        %359 = vst.msk [vmem:[#allocation2 + $0xa8] sm:$0xff] %vm336, 0.0
        %360 = vst.msk [vmem:[#allocation2 + $0xb0] sm:$0xff] %vm336, 0.0
        %361 = vst.msk [vmem:[#allocation2 + $0xb8] sm:$0x3] %vm339, 0.0
        %362 = vst.msk [vmem:[#allocation2 + $0xc0] sm:$0xff] %vm336, 0.0
        %363 = vst.msk [vmem:[#allocation2 + $0xc8] sm:$0xff] %vm336, 0.0
        %364 = vst.msk [vmem:[#allocation2 + $0xd0] sm:$0x3] %vm339, 0.0
        %365 = vst.msk [vmem:[#allocation2 + $0xd8] sm:$0xff] %vm336, 0.0
        %366 = vst.msk [vmem:[#allocation2 + $0xe0] sm:$0xff] %vm336, 0.0
        %367 = vst.msk [vmem:[#allocation2 + $0xe8] sm:$0x3] %vm339, 0.0
        %368 = vst.msk [vmem:[#allocation2 + $0xf0] sm:$0xff] %vm336, 0.0
        %369 = vst.msk [vmem:[#allocation2 + $0xf8] sm:$0xff] %vm336, 0.0
        %370 = vst.msk [vmem:[#allocation2 + $0x100] sm:$0x3] %vm339, 0.0
        %371 = vst.msk [vmem:[#allocation2 + $0x108] sm:$0xff] %vm336, 0.0
        %372 = vst.msk [vmem:[#allocation2 + $0x110] sm:$0xff] %vm336, 0.0
        %373 = vst.msk [vmem:[#allocation2 + $0x118] sm:$0x3] %vm339, 0.0
        %374 = vst.msk [vmem:[#allocation2 + $0x120] sm:$0xff] %vm336, 0.0
        %375 = vst.msk [vmem:[#allocation2 + $0x128] sm:$0xff] %vm336, 0.0
        %376 = vst.msk [vmem:[#allocation2 + $0x130] sm:$0x3] %vm339, 0.0
        %377 = vst.msk [vmem:[#allocation2 + $0x138] sm:$0xff] %vm336, 0.0
        %378 = vst.msk [vmem:[#allocation2 + $0x140] sm:$0xff] %vm336, 0.0
        %379 = vst.msk [vmem:[#allocation2 + $0x148] sm:$0x3] %vm339, 0.0
        %380 = vst.msk [vmem:[#allocation2 + $0x150] sm:$0xff] %vm336, 0.0
        %381 = vst.msk [vmem:[#allocation2 + $0x158] sm:$0xff] %vm336, 0.0
        %382 = vst.msk [vmem:[#allocation2 + $0x160] sm:$0x3] %vm339, 0.0
        %383 = vst.msk [vmem:[#allocation2 + $0x168] sm:$0xff] %vm336, 0.0
        %384 = vst.msk [vmem:[#allocation2 + $0x170] sm:$0xff] %vm336, 0.0
        %385 = vst.msk [vmem:[#allocation2 + $0x178] sm:$0x3] %vm339, 0.0
        %386 = vst.msk [vmem:[#allocation2 + $0x180] sm:$0xff] %vm336, 0.0
        %387 = vst.msk [vmem:[#allocation2 + $0x188] sm:$0xff] %vm336, 0.0
        %388 = vst.msk [vmem:[#allocation2 + $0x190] sm:$0x3] %vm339, 0.0
        %389 = vst.msk [vmem:[#allocation2 + $0x198] sm:$0xff] %vm336, 0.0
        %390 = vst.msk [vmem:[#allocation2 + $0x1a0] sm:$0xff] %vm336, 0.0
        %391 = vst.msk [vmem:[#allocation2 + $0x1a8] sm:$0x3] %vm339, 0.0
        %s392 = scalar_lea.vmem [#allocation2], 24
        %393 = vst.msk [vmem:[%s392 + $0x1] sm:$0xff] %vm336, %v288
        %394 = vst.msk [vmem:[%s392 + $0x9] sm:$0xff] %vm336, %v289
        %395 = vst.msk [vmem:[%s392 + $0x19] sm:$0xff] %vm336, %v290
        %396 = vst.msk [vmem:[%s392 + $0x21] sm:$0xff] %vm336, %v291
        %397 = vst.msk [vmem:[%s392 + $0x31] sm:$0xff] %vm336, %v292
        %398 = vst.msk [vmem:[%s392 + $0x39] sm:$0xff] %vm336, %v293
        %399 = vst.msk [vmem:[%s392 + $0x49] sm:$0xff] %vm336, %v294
        %400 = vst.msk [vmem:[%s392 + $0x51] sm:$0xff] %vm336, %v295
        %401 = vst.msk [vmem:[%s392 + $0x61] sm:$0xff] %vm336, %v296
        %402 = vst.msk [vmem:[%s392 + $0x69] sm:$0xff] %vm336, %v297
        %403 = vst.msk [vmem:[%s392 + $0x79] sm:$0xff] %vm336, %v298
        %404 = vst.msk [vmem:[%s392 + $0x81] sm:$0xff] %vm336, %v299
        %405 = vst.msk [vmem:[%s392 + $0x91] sm:$0xff] %vm336, %v300
        %406 = vst.msk [vmem:[%s392 + $0x99] sm:$0xff] %vm336, %v301
        %407 = vst.msk [vmem:[%s392 + $0xa9] sm:$0xff] %vm336, %v302
        %408 = vst.msk [vmem:[%s392 + $0xb1] sm:$0xff] %vm336, %v303
        %409 = vst.msk [vmem:[%s392 + $0xc1] sm:$0xff] %vm336, %v320
        %410 = vst.msk [vmem:[%s392 + $0xc9] sm:$0xff] %vm336, %v321
        %411 = vst.msk [vmem:[%s392 + $0xd9] sm:$0xff] %vm336, %v322
        %412 = vst.msk [vmem:[%s392 + $0xe1] sm:$0xff] %vm336, %v323
        %413 = vst.msk [vmem:[%s392 + $0xf1] sm:$0xff] %vm336, %v324
        %414 = vst.msk [vmem:[%s392 + $0xf9] sm:$0xff] %vm336, %v325
        %415 = vst.msk [vmem:[%s392 + $0x109] sm:$0xff] %vm336, %v326
        %416 = vst.msk [vmem:[%s392 + $0x111] sm:$0xff] %vm336, %v327
        %417 = vst.msk [vmem:[%s392 + $0x121] sm:$0xff] %vm336, %v328
        %418 = vst.msk [vmem:[%s392 + $0x129] sm:$0xff] %vm336, %v329
        %419 = vst.msk [vmem:[%s392 + $0x139] sm:$0xff] %vm336, %v330
        %420 = vst.msk [vmem:[%s392 + $0x141] sm:$0xff] %vm336, %v331
        %421 = vst.msk [vmem:[%s392 + $0x151] sm:$0xff] %vm336, %v332
        %422 = vst.msk [vmem:[%s392 + $0x159] sm:$0xff] %vm336, %v333
        %423 = vst.msk [vmem:[%s392 + $0x169] sm:$0xff] %vm336, %v334
        %424 = vst.msk [vmem:[%s392 + $0x171] sm:$0xff] %vm336, %v335
        %v425 = vld [vmem:[#allocation2] sm:$0xff]
        %v426 = vld [vmem:[#allocation2 + $0x8] sm:$0xff]
        %v427 = vld [vmem:[#allocation2 + $0x18] sm:$0xff]
        %v428 = vld [vmem:[#allocation2 + $0x20] sm:$0xff]
        %v429 = vld [vmem:[#allocation2 + $0x30] sm:$0xff]
        %v430 = vld [vmem:[#allocation2 + $0x38] sm:$0xff]
        %v431 = vld [vmem:[#allocation2 + $0x48] sm:$0xff]
        %v432 = vld [vmem:[#allocation2 + $0x50] sm:$0xff]
        %v433 = vld [vmem:[#allocation2 + $0x60] sm:$0xff]
        %v434 = vld [vmem:[#allocation2 + $0x68] sm:$0xff]
        %v435 = vld [vmem:[#allocation2 + $0x78] sm:$0xff]
        %v436 = vld [vmem:[#allocation2 + $0x80] sm:$0xff]
        %v437 = vld [vmem:[#allocation2 + $0x90] sm:$0xff]
        %v438 = vld [vmem:[#allocation2 + $0x98] sm:$0xff]
        %v439 = vld [vmem:[#allocation2 + $0xa8] sm:$0xff]
        %v440 = vld [vmem:[#allocation2 + $0xb0] sm:$0xff]
        %v441 = vld [vmem:[#allocation2 + $0xc0] sm:$0xff]
        %v442 = vld [vmem:[#allocation2 + $0xc8] sm:$0xff]
        %v443 = vld [vmem:[#allocation2 + $0xd8] sm:$0xff]
        %v444 = vld [vmem:[#allocation2 + $0xe0] sm:$0xff]
        %v445 = vld [vmem:[#allocation2 + $0xf0] sm:$0xff]
        %v446 = vld [vmem:[#allocation2 + $0xf8] sm:$0xff]
        %v447 = vld [vmem:[#allocation2 + $0x108] sm:$0xff]
        %v448 = vld [vmem:[#allocation2 + $0x110] sm:$0xff]
        %v449 = vld [vmem:[#allocation2 + $0x120] sm:$0xff]
        %v450 = vld [vmem:[#allocation2 + $0x128] sm:$0xff]
        %v451 = vld [vmem:[#allocation2 + $0x138] sm:$0xff]
        %v452 = vld [vmem:[#allocation2 + $0x140] sm:$0xff]
        %v453 = vld [vmem:[#allocation2 + $0x150] sm:$0xff]
        %v454 = vld [vmem:[#allocation2 + $0x158] sm:$0xff]
        %v455 = vld [vmem:[#allocation2 + $0x168] sm:$0xff]
        %v456 = vld [vmem:[#allocation2 + $0x170] sm:$0xff]
        %457 = vst.msk [vmem:[#allocation3] sm:$0xff] %vm336, %v425
        %458 = vst.msk [vmem:[#allocation3 + $0x8] sm:$0xff] %vm336, %v426
        %459 = vst.msk [vmem:[#allocation3 + $0x10] sm:$0xff] %vm336, %v427
        %460 = vst.msk [vmem:[#allocation3 + $0x18] sm:$0xff] %vm336, %v428
        %461 = vst.msk [vmem:[#allocation3 + $0x20] sm:$0xff] %vm336, %v429
        %462 = vst.msk [vmem:[#allocation3 + $0x28] sm:$0xff] %vm336, %v430
        %463 = vst.msk [vmem:[#allocation3 + $0x30] sm:$0xff] %vm336, %v431
        %464 = vst.msk [vmem:[#allocation3 + $0x38] sm:$0xff] %vm336, %v432
        %465 = vst.msk [vmem:[#allocation3 + $0x40] sm:$0xff] %vm336, %v433
        %466 = vst.msk [vmem:[#allocation3 + $0x48] sm:$0xff] %vm336, %v434
        %467 = vst.msk [vmem:[#allocation3 + $0x50] sm:$0xff] %vm336, %v435
        %468 = vst.msk [vmem:[#allocation3 + $0x58] sm:$0xff] %vm336, %v436
        %469 = vst.msk [vmem:[#allocation3 + $0x60] sm:$0xff] %vm336, %v437
        %470 = vst.msk [vmem:[#allocation3 + $0x68] sm:$0xff] %vm336, %v438
        %471 = vst.msk [vmem:[#allocation3 + $0x70] sm:$0xff] %vm336, %v439
        %472 = vst.msk [vmem:[#allocation3 + $0x78] sm:$0xff] %vm336, %v440
        %473 = vst.msk [vmem:[#allocation3 + $0x80] sm:$0xff] %vm336, %v441
        %474 = vst.msk [vmem:[#allocation3 + $0x88] sm:$0xff] %vm336, %v442
        %475 = vst.msk [vmem:[#allocation3 + $0x90] sm:$0xff] %vm336, %v443
        %476 = vst.msk [vmem:[#allocation3 + $0x98] sm:$0xff] %vm336, %v444
        %477 = vst.msk [vmem:[#allocation3 + $0xa0] sm:$0xff] %vm336, %v445
        %478 = vst.msk [vmem:[#allocation3 + $0xa8] sm:$0xff] %vm336, %v446
        %479 = vst.msk [vmem:[#allocation3 + $0xb0] sm:$0xff] %vm336, %v447
        %480 = vst.msk [vmem:[#allocation3 + $0xb8] sm:$0xff] %vm336, %v448
        %481 = vst.msk [vmem:[#allocation3 + $0xc0] sm:$0xff] %vm336, %v449
        %482 = vst.msk [vmem:[#allocation3 + $0xc8] sm:$0xff] %vm336, %v450
        %483 = vst.msk [vmem:[#allocation3 + $0xd0] sm:$0xff] %vm336, %v451
        %484 = vst.msk [vmem:[#allocation3 + $0xd8] sm:$0xff] %vm336, %v452
        %485 = vst.msk [vmem:[#allocation3 + $0xe0] sm:$0xff] %vm336, %v453
        %486 = vst.msk [vmem:[#allocation3 + $0xe8] sm:$0xff] %vm336, %v454
        %487 = vst.msk [vmem:[#allocation3 + $0xf0] sm:$0xff] %vm336, %v455
        %488 = vst.msk [vmem:[#allocation3 + $0xf8] sm:$0xff] %vm336, %v456
        %v489 = vld [vmem:[#allocation2 + $0x1] sm:$0xff]
        %v490 = vld [vmem:[#allocation2 + $0x9] sm:$0xff]
        %v491 = vld [vmem:[#allocation2 + $0x19] sm:$0xff]
        %v492 = vld [vmem:[#allocation2 + $0x21] sm:$0xff]
        %v493 = vld [vmem:[#allocation2 + $0x31] sm:$0xff]
        %v494 = vld [vmem:[#allocation2 + $0x39] sm:$0xff]
        %v495 = vld [vmem:[#allocation2 + $0x49] sm:$0xff]
        %v496 = vld [vmem:[#allocation2 + $0x51] sm:$0xff]
        %v497 = vld [vmem:[#allocation2 + $0x61] sm:$0xff]
        %v498 = vld [vmem:[#allocation2 + $0x69] sm:$0xff]
        %v499 = vld [vmem:[#allocation2 + $0x79] sm:$0xff]
        %v500 = vld [vmem:[#allocation2 + $0x81] sm:$0xff]
        %v501 = vld [vmem:[#allocation2 + $0x91] sm:$0xff]
        %v502 = vld [vmem:[#allocation2 + $0x99] sm:$0xff]
        %v503 = vld [vmem:[#allocation2 + $0xa9] sm:$0xff]
        %v504 = vld [vmem:[#allocation2 + $0xb1] sm:$0xff]
        %v505 = vld [vmem:[#allocation2 + $0xc1] sm:$0xff]
        %v506 = vld [vmem:[#allocation2 + $0xc9] sm:$0xff]
        %v507 = vld [vmem:[#allocation2 + $0xd9] sm:$0xff]
        %v508 = vld [vmem:[#allocation2 + $0xe1] sm:$0xff]
        %v509 = vld [vmem:[#allocation2 + $0xf1] sm:$0xff]
        %v510 = vld [vmem:[#allocation2 + $0xf9] sm:$0xff]
        %v511 = vld [vmem:[#allocation2 + $0x109] sm:$0xff]
        %v512 = vld [vmem:[#allocation2 + $0x111] sm:$0xff]
        %v513 = vld [vmem:[#allocation2 + $0x121] sm:$0xff]
        %v514 = vld [vmem:[#allocation2 + $0x129] sm:$0xff]
        %v515 = vld [vmem:[#allocation2 + $0x139] sm:$0xff]
        %v516 = vld [vmem:[#allocation2 + $0x141] sm:$0xff]
        %v517 = vld [vmem:[#allocation2 + $0x151] sm:$0xff]
        %v518 = vld [vmem:[#allocation2 + $0x159] sm:$0xff]
        %v519 = vld [vmem:[#allocation2 + $0x169] sm:$0xff]
        %v520 = vld [vmem:[#allocation2 + $0x171] sm:$0xff]
        %553 = vrot.lane.b32.xlu0 %v489, 4
        %v554 = vpop.permute.xlu0 %553
        %555 = vrot.lane.b32.xlu0 %v490, 4
        %v556 = vpop.permute.xlu0 %555
        %557 = vrot.lane.b32.xlu0 %v491, 4
        %v558 = vpop.permute.xlu0 %557
        %559 = vrot.lane.b32.xlu0 %v492, 4
        %v560 = vpop.permute.xlu0 %559
        %561 = vrot.lane.b32.xlu0 %v493, 4
        %v562 = vpop.permute.xlu0 %561
        %563 = vrot.lane.b32.xlu0 %v494, 4
        %v564 = vpop.permute.xlu0 %563
        %565 = vrot.lane.b32.xlu0 %v495, 4
        %v566 = vpop.permute.xlu0 %565
        %567 = vrot.lane.b32.xlu0 %v496, 4
        %v568 = vpop.permute.xlu0 %567
        %569 = vrot.lane.b32.xlu0 %v497, 4
        %v570 = vpop.permute.xlu0 %569
        %571 = vrot.lane.b32.xlu0 %v498, 4
        %v572 = vpop.permute.xlu0 %571
        %573 = vrot.lane.b32.xlu0 %v499, 4
        %v574 = vpop.permute.xlu0 %573
        %575 = vrot.lane.b32.xlu0 %v500, 4
        %v576 = vpop.permute.xlu0 %575
        %577 = vrot.lane.b32.xlu0 %v501, 4
        %v578 = vpop.permute.xlu0 %577
        %579 = vrot.lane.b32.xlu0 %v502, 4
        %v580 = vpop.permute.xlu0 %579
        %581 = vrot.lane.b32.xlu0 %v503, 4
        %v582 = vpop.permute.xlu0 %581
        %583 = vrot.lane.b32.xlu0 %v504, 4
        %v584 = vpop.permute.xlu0 %583
        %585 = vrot.lane.b32.xlu0 %v505, 4
        %v586 = vpop.permute.xlu0 %585
        %587 = vrot.lane.b32.xlu0 %v506, 4
        %v588 = vpop.permute.xlu0 %587
        %589 = vrot.lane.b32.xlu0 %v507, 4
        %v590 = vpop.permute.xlu0 %589
        %591 = vrot.lane.b32.xlu0 %v508, 4
        %v592 = vpop.permute.xlu0 %591
        %593 = vrot.lane.b32.xlu0 %v509, 4
        %v594 = vpop.permute.xlu0 %593
        %595 = vrot.lane.b32.xlu0 %v510, 4
        %v596 = vpop.permute.xlu0 %595
        %597 = vrot.lane.b32.xlu0 %v511, 4
        %v598 = vpop.permute.xlu0 %597
        %599 = vrot.lane.b32.xlu0 %v512, 4
        %v600 = vpop.permute.xlu0 %599
        %601 = vrot.lane.b32.xlu0 %v513, 4
        %v602 = vpop.permute.xlu0 %601
        %603 = vrot.lane.b32.xlu0 %v514, 4
        %v604 = vpop.permute.xlu0 %603
        %605 = vrot.lane.b32.xlu0 %v515, 4
        %v606 = vpop.permute.xlu0 %605
        %607 = vrot.lane.b32.xlu0 %v516, 4
        %v608 = vpop.permute.xlu0 %607
        %609 = vrot.lane.b32.xlu0 %v517, 4
        %v610 = vpop.permute.xlu0 %609
        %611 = vrot.lane.b32.xlu0 %v518, 4
        %v612 = vpop.permute.xlu0 %611
        %613 = vrot.lane.b32.xlu0 %v519, 4
        %v614 = vpop.permute.xlu0 %613
        %615 = vrot.lane.b32.xlu0 %v520, 4
        %v616 = vpop.permute.xlu0 %615
        %vm649 = vcmask 64544
        %650 = vst.msk [vmem:[#allocation3] sm:$0xff] %vm649, %v554
        %651 = vst.msk [vmem:[#allocation3 + $0x8] sm:$0xff] %vm649, %v556
        %652 = vst.msk [vmem:[#allocation3 + $0x10] sm:$0xff] %vm649, %v558
        %653 = vst.msk [vmem:[#allocation3 + $0x18] sm:$0xff] %vm649, %v560
        %654 = vst.msk [vmem:[#allocation3 + $0x20] sm:$0xff] %vm649, %v562
        %655 = vst.msk [vmem:[#allocation3 + $0x28] sm:$0xff] %vm649, %v564
        %656 = vst.msk [vmem:[#allocation3 + $0x30] sm:$0xff] %vm649, %v566
        %657 = vst.msk [vmem:[#allocation3 + $0x38] sm:$0xff] %vm649, %v568
        %658 = vst.msk [vmem:[#allocation3 + $0x40] sm:$0xff] %vm649, %v570
        %659 = vst.msk [vmem:[#allocation3 + $0x48] sm:$0xff] %vm649, %v572
        %660 = vst.msk [vmem:[#allocation3 + $0x50] sm:$0xff] %vm649, %v574
        %661 = vst.msk [vmem:[#allocation3 + $0x58] sm:$0xff] %vm649, %v576
        %662 = vst.msk [vmem:[#allocation3 + $0x60] sm:$0xff] %vm649, %v578
        %663 = vst.msk [vmem:[#allocation3 + $0x68] sm:$0xff] %vm649, %v580
        %664 = vst.msk [vmem:[#allocation3 + $0x70] sm:$0xff] %vm649, %v582
        %665 = vst.msk [vmem:[#allocation3 + $0x78] sm:$0xff] %vm649, %v584
        %666 = vst.msk [vmem:[#allocation3 + $0x80] sm:$0xff] %vm649, %v586
        %667 = vst.msk [vmem:[#allocation3 + $0x88] sm:$0xff] %vm649, %v588
        %668 = vst.msk [vmem:[#allocation3 + $0x90] sm:$0xff] %vm649, %v590
        %669 = vst.msk [vmem:[#allocation3 + $0x98] sm:$0xff] %vm649, %v592
        %670 = vst.msk [vmem:[#allocation3 + $0xa0] sm:$0xff] %vm649, %v594
        %671 = vst.msk [vmem:[#allocation3 + $0xa8] sm:$0xff] %vm649, %v596
        %672 = vst.msk [vmem:[#allocation3 + $0xb0] sm:$0xff] %vm649, %v598
        %673 = vst.msk [vmem:[#allocation3 + $0xb8] sm:$0xff] %vm649, %v600
        %674 = vst.msk [vmem:[#allocation3 + $0xc0] sm:$0xff] %vm649, %v602
        %675 = vst.msk [vmem:[#allocation3 + $0xc8] sm:$0xff] %vm649, %v604
        %676 = vst.msk [vmem:[#allocation3 + $0xd0] sm:$0xff] %vm649, %v606
        %677 = vst.msk [vmem:[#allocation3 + $0xd8] sm:$0xff] %vm649, %v608
        %678 = vst.msk [vmem:[#allocation3 + $0xe0] sm:$0xff] %vm649, %v610
        %679 = vst.msk [vmem:[#allocation3 + $0xe8] sm:$0xff] %vm649, %v612
        %680 = vst.msk [vmem:[#allocation3 + $0xf0] sm:$0xff] %vm649, %v614
        %681 = vst.msk [vmem:[#allocation3 + $0xf8] sm:$0xff] %vm649, %v616
        %v682 = vld [vmem:[#allocation2 + $0x2] sm:$0xff]
        %v683 = vld [vmem:[#allocation2 + $0xa] sm:$0xff]
        %v684 = vld [vmem:[#allocation2 + $0x1a] sm:$0xff]
        %v685 = vld [vmem:[#allocation2 + $0x22] sm:$0xff]
        %v686 = vld [vmem:[#allocation2 + $0x32] sm:$0xff]
        %v687 = vld [vmem:[#allocation2 + $0x3a] sm:$0xff]
        %v688 = vld [vmem:[#allocation2 + $0x4a] sm:$0xff]
        %v689 = vld [vmem:[#allocation2 + $0x52] sm:$0xff]
        %v690 = vld [vmem:[#allocation2 + $0x62] sm:$0xff]
        %v691 = vld [vmem:[#allocation2 + $0x6a] sm:$0xff]
        %v692 = vld [vmem:[#allocation2 + $0x7a] sm:$0xff]
        %v693 = vld [vmem:[#allocation2 + $0x82] sm:$0xff]
        %v694 = vld [vmem:[#allocation2 + $0x92] sm:$0xff]
        %v695 = vld [vmem:[#allocation2 + $0x9a] sm:$0xff]
        %v696 = vld [vmem:[#allocation2 + $0xaa] sm:$0xff]
        %v697 = vld [vmem:[#allocation2 + $0xb2] sm:$0xff]
        %v698 = vld [vmem:[#allocation2 + $0xc2] sm:$0xff]
        %v699 = vld [vmem:[#allocation2 + $0xca] sm:$0xff]
        %v700 = vld [vmem:[#allocation2 + $0xda] sm:$0xff]
        %v701 = vld [vmem:[#allocation2 + $0xe2] sm:$0xff]
        %v702 = vld [vmem:[#allocation2 + $0xf2] sm:$0xff]
        %v703 = vld [vmem:[#allocation2 + $0xfa] sm:$0xff]
        %v704 = vld [vmem:[#allocation2 + $0x10a] sm:$0xff]
        %v705 = vld [vmem:[#allocation2 + $0x112] sm:$0xff]
        %v706 = vld [vmem:[#allocation2 + $0x122] sm:$0xff]
        %v707 = vld [vmem:[#allocation2 + $0x12a] sm:$0xff]
        %v708 = vld [vmem:[#allocation2 + $0x13a] sm:$0xff]
        %v709 = vld [vmem:[#allocation2 + $0x142] sm:$0xff]
        %v710 = vld [vmem:[#allocation2 + $0x152] sm:$0xff]
        %v711 = vld [vmem:[#allocation2 + $0x15a] sm:$0xff]
        %v712 = vld [vmem:[#allocation2 + $0x16a] sm:$0xff]
        %v713 = vld [vmem:[#allocation2 + $0x172] sm:$0xff]
        %746 = vrot.lane.b32.xlu0 %v682, 8
        %v747 = vpop.permute.xlu0 %746
        %748 = vrot.lane.b32.xlu0 %v683, 8
        %v749 = vpop.permute.xlu0 %748
        %750 = vrot.lane.b32.xlu0 %v684, 8
        %v751 = vpop.permute.xlu0 %750
        %752 = vrot.lane.b32.xlu0 %v685, 8
        %v753 = vpop.permute.xlu0 %752
        %754 = vrot.lane.b32.xlu0 %v686, 8
        %v755 = vpop.permute.xlu0 %754
        %756 = vrot.lane.b32.xlu0 %v687, 8
        %v757 = vpop.permute.xlu0 %756
        %758 = vrot.lane.b32.xlu0 %v688, 8
        %v759 = vpop.permute.xlu0 %758
        %760 = vrot.lane.b32.xlu0 %v689, 8
        %v761 = vpop.permute.xlu0 %760
        %762 = vrot.lane.b32.xlu0 %v690, 8
        %v763 = vpop.permute.xlu0 %762
        %764 = vrot.lane.b32.xlu0 %v691, 8
        %v765 = vpop.permute.xlu0 %764
        %766 = vrot.lane.b32.xlu0 %v692, 8
        %v767 = vpop.permute.xlu0 %766
        %768 = vrot.lane.b32.xlu0 %v693, 8
        %v769 = vpop.permute.xlu0 %768
        %770 = vrot.lane.b32.xlu0 %v694, 8
        %v771 = vpop.permute.xlu0 %770
        %772 = vrot.lane.b32.xlu0 %v695, 8
        %v773 = vpop.permute.xlu0 %772
        %774 = vrot.lane.b32.xlu0 %v696, 8
        %v775 = vpop.permute.xlu0 %774
        %776 = vrot.lane.b32.xlu0 %v697, 8
        %v777 = vpop.permute.xlu0 %776
        %778 = vrot.lane.b32.xlu0 %v698, 8
        %v779 = vpop.permute.xlu0 %778
        %780 = vrot.lane.b32.xlu0 %v699, 8
        %v781 = vpop.permute.xlu0 %780
        %782 = vrot.lane.b32.xlu0 %v700, 8
        %v783 = vpop.permute.xlu0 %782
        %784 = vrot.lane.b32.xlu0 %v701, 8
        %v785 = vpop.permute.xlu0 %784
        %786 = vrot.lane.b32.xlu0 %v702, 8
        %v787 = vpop.permute.xlu0 %786
        %788 = vrot.lane.b32.xlu0 %v703, 8
        %v789 = vpop.permute.xlu0 %788
        %790 = vrot.lane.b32.xlu0 %v704, 8
        %v791 = vpop.permute.xlu0 %790
        %792 = vrot.lane.b32.xlu0 %v705, 8
        %v793 = vpop.permute.xlu0 %792
        %794 = vrot.lane.b32.xlu0 %v706, 8
        %v795 = vpop.permute.xlu0 %794
        %796 = vrot.lane.b32.xlu0 %v707, 8
        %v797 = vpop.permute.xlu0 %796
        %798 = vrot.lane.b32.xlu0 %v708, 8
        %v799 = vpop.permute.xlu0 %798
        %800 = vrot.lane.b32.xlu0 %v709, 8
        %v801 = vpop.permute.xlu0 %800
        %802 = vrot.lane.b32.xlu0 %v710, 8
        %v803 = vpop.permute.xlu0 %802
        %804 = vrot.lane.b32.xlu0 %v711, 8
        %v805 = vpop.permute.xlu0 %804
        %806 = vrot.lane.b32.xlu0 %v712, 8
        %v807 = vpop.permute.xlu0 %806
        %808 = vrot.lane.b32.xlu0 %v713, 8
        %v809 = vpop.permute.xlu0 %808
        %vm842 = vcmask 97344
        %843 = vst.msk [vmem:[#allocation3] sm:$0xff] %vm842, %v747
        %844 = vst.msk [vmem:[#allocation3 + $0x8] sm:$0xff] %vm842, %v749
        %845 = vst.msk [vmem:[#allocation3 + $0x10] sm:$0xff] %vm842, %v751
        %846 = vst.msk [vmem:[#allocation3 + $0x18] sm:$0xff] %vm842, %v753
        %847 = vst.msk [vmem:[#allocation3 + $0x20] sm:$0xff] %vm842, %v755
        %848 = vst.msk [vmem:[#allocation3 + $0x28] sm:$0xff] %vm842, %v757
        %849 = vst.msk [vmem:[#allocation3 + $0x30] sm:$0xff] %vm842, %v759
        %850 = vst.msk [vmem:[#allocation3 + $0x38] sm:$0xff] %vm842, %v761
        %851 = vst.msk [vmem:[#allocation3 + $0x40] sm:$0xff] %vm842, %v763
        %852 = vst.msk [vmem:[#allocation3 + $0x48] sm:$0xff] %vm842, %v765
        %853 = vst.msk [vmem:[#allocation3 + $0x50] sm:$0xff] %vm842, %v767
        %854 = vst.msk [vmem:[#allocation3 + $0x58] sm:$0xff] %vm842, %v769
        %855 = vst.msk [vmem:[#allocation3 + $0x60] sm:$0xff] %vm842, %v771
        %856 = vst.msk [vmem:[#allocation3 + $0x68] sm:$0xff] %vm842, %v773
        %857 = vst.msk [vmem:[#allocation3 + $0x70] sm:$0xff] %vm842, %v775
        %858 = vst.msk [vmem:[#allocation3 + $0x78] sm:$0xff] %vm842, %v777
        %859 = vst.msk [vmem:[#allocation3 + $0x80] sm:$0xff] %vm842, %v779
        %860 = vst.msk [vmem:[#allocation3 + $0x88] sm:$0xff] %vm842, %v781
        %861 = vst.msk [vmem:[#allocation3 + $0x90] sm:$0xff] %vm842, %v783
        %862 = vst.msk [vmem:[#allocation3 + $0x98] sm:$0xff] %vm842, %v785
        %863 = vst.msk [vmem:[#allocation3 + $0xa0] sm:$0xff] %vm842, %v787
        %864 = vst.msk [vmem:[#allocation3 + $0xa8] sm:$0xff] %vm842, %v789
        %865 = vst.msk [vmem:[#allocation3 + $0xb0] sm:$0xff] %vm842, %v791
        %866 = vst.msk [vmem:[#allocation3 + $0xb8] sm:$0xff] %vm842, %v793
        %867 = vst.msk [vmem:[#allocation3 + $0xc0] sm:$0xff] %vm842, %v795
        %868 = vst.msk [vmem:[#allocation3 + $0xc8] sm:$0xff] %vm842, %v797
        %869 = vst.msk [vmem:[#allocation3 + $0xd0] sm:$0xff] %vm842, %v799
        %870 = vst.msk [vmem:[#allocation3 + $0xd8] sm:$0xff] %vm842, %v801
        %871 = vst.msk [vmem:[#allocation3 + $0xe0] sm:$0xff] %vm842, %v803
        %872 = vst.msk [vmem:[#allocation3 + $0xe8] sm:$0xff] %vm842, %v805
        %873 = vst.msk [vmem:[#allocation3 + $0xf0] sm:$0xff] %vm842, %v807
        %874 = vst.msk [vmem:[#allocation3 + $0xf8] sm:$0xff] %vm842, %v809
        %v875 = vld [vmem:[%s392] sm:$0xff]
        %v876 = vld [vmem:[%s392 + $0x8] sm:$0xff]
        %v877 = vld [vmem:[%s392 + $0x18] sm:$0xff]
        %v878 = vld [vmem:[%s392 + $0x20] sm:$0xff]
        %v879 = vld [vmem:[%s392 + $0x30] sm:$0xff]
        %v880 = vld [vmem:[%s392 + $0x38] sm:$0xff]
        %v881 = vld [vmem:[%s392 + $0x48] sm:$0xff]
        %v882 = vld [vmem:[%s392 + $0x50] sm:$0xff]
        %v883 = vld [vmem:[%s392 + $0x60] sm:$0xff]
        %v884 = vld [vmem:[%s392 + $0x68] sm:$0xff]
        %v885 = vld [vmem:[%s392 + $0x78] sm:$0xff]
        %v886 = vld [vmem:[%s392 + $0x80] sm:$0xff]
        %v887 = vld [vmem:[%s392 + $0x90] sm:$0xff]
        %v888 = vld [vmem:[%s392 + $0x98] sm:$0xff]
        %v889 = vld [vmem:[%s392 + $0xa8] sm:$0xff]
        %v890 = vld [vmem:[%s392 + $0xb0] sm:$0xff]
        %v891 = vld [vmem:[%s392 + $0xc0] sm:$0xff]
        %v892 = vld [vmem:[%s392 + $0xc8] sm:$0xff]
        %v893 = vld [vmem:[%s392 + $0xd8] sm:$0xff]
        %v894 = vld [vmem:[%s392 + $0xe0] sm:$0xff]
        %v895 = vld [vmem:[%s392 + $0xf0] sm:$0xff]
        %v896 = vld [vmem:[%s392 + $0xf8] sm:$0xff]
        %v897 = vld [vmem:[%s392 + $0x108] sm:$0xff]
        %v898 = vld [vmem:[%s392 + $0x110] sm:$0xff]
        %v899 = vld [vmem:[%s392 + $0x120] sm:$0xff]
        %v900 = vld [vmem:[%s392 + $0x128] sm:$0xff]
        %v901 = vld [vmem:[%s392 + $0x138] sm:$0xff]
        %v902 = vld [vmem:[%s392 + $0x140] sm:$0xff]
        %v903 = vld [vmem:[%s392 + $0x150] sm:$0xff]
        %v904 = vld [vmem:[%s392 + $0x158] sm:$0xff]
        %v905 = vld [vmem:[%s392 + $0x168] sm:$0xff]
        %v906 = vld [vmem:[%s392 + $0x170] sm:$0xff]
        %939 = vrot.lane.b32.xlu0 %v875, 12
        %v940 = vpop.permute.xlu0 %939
        %941 = vrot.lane.b32.xlu0 %v876, 12
        %v942 = vpop.permute.xlu0 %941
        %943 = vrot.lane.b32.xlu0 %v877, 12
        %v944 = vpop.permute.xlu0 %943
        %945 = vrot.lane.b32.xlu0 %v878, 12
        %v946 = vpop.permute.xlu0 %945
        %947 = vrot.lane.b32.xlu0 %v879, 12
        %v948 = vpop.permute.xlu0 %947
        %949 = vrot.lane.b32.xlu0 %v880, 12
        %v950 = vpop.permute.xlu0 %949
        %951 = vrot.lane.b32.xlu0 %v881, 12
        %v952 = vpop.permute.xlu0 %951
        %953 = vrot.lane.b32.xlu0 %v882, 12
        %v954 = vpop.permute.xlu0 %953
        %955 = vrot.lane.b32.xlu0 %v883, 12
        %v956 = vpop.permute.xlu0 %955
        %957 = vrot.lane.b32.xlu0 %v884, 12
        %v958 = vpop.permute.xlu0 %957
        %959 = vrot.lane.b32.xlu0 %v885, 12
        %v960 = vpop.permute.xlu0 %959
        %961 = vrot.lane.b32.xlu0 %v886, 12
        %v962 = vpop.permute.xlu0 %961
        %963 = vrot.lane.b32.xlu0 %v887, 12
        %v964 = vpop.permute.xlu0 %963
        %965 = vrot.lane.b32.xlu0 %v888, 12
        %v966 = vpop.permute.xlu0 %965
        %967 = vrot.lane.b32.xlu0 %v889, 12
        %v968 = vpop.permute.xlu0 %967
        %969 = vrot.lane.b32.xlu0 %v890, 12
        %v970 = vpop.permute.xlu0 %969
        %971 = vrot.lane.b32.xlu0 %v891, 12
        %v972 = vpop.permute.xlu0 %971
        %973 = vrot.lane.b32.xlu0 %v892, 12
        %v974 = vpop.permute.xlu0 %973
        %975 = vrot.lane.b32.xlu0 %v893, 12
        %v976 = vpop.permute.xlu0 %975
        %977 = vrot.lane.b32.xlu0 %v894, 12
        %v978 = vpop.permute.xlu0 %977
        %979 = vrot.lane.b32.xlu0 %v895, 12
        %v980 = vpop.permute.xlu0 %979
        %981 = vrot.lane.b32.xlu0 %v896, 12
        %v982 = vpop.permute.xlu0 %981
        %983 = vrot.lane.b32.xlu0 %v897, 12
        %v984 = vpop.permute.xlu0 %983
        %985 = vrot.lane.b32.xlu0 %v898, 12
        %v986 = vpop.permute.xlu0 %985
        %987 = vrot.lane.b32.xlu0 %v899, 12
        %v988 = vpop.permute.xlu0 %987
        %989 = vrot.lane.b32.xlu0 %v900, 12
        %v990 = vpop.permute.xlu0 %989
        %991 = vrot.lane.b32.xlu0 %v901, 12
        %v992 = vpop.permute.xlu0 %991
        %993 = vrot.lane.b32.xlu0 %v902, 12
        %v994 = vpop.permute.xlu0 %993
        %995 = vrot.lane.b32.xlu0 %v903, 12
        %v996 = vpop.permute.xlu0 %995
        %997 = vrot.lane.b32.xlu0 %v904, 12
        %v998 = vpop.permute.xlu0 %997
        %999 = vrot.lane.b32.xlu0 %v905, 12
        %v1000 = vpop.permute.xlu0 %999
        %1001 = vrot.lane.b32.xlu0 %v906, 12
        %v1002 = vpop.permute.xlu0 %1001
        %vm1035 = vcmask 130144
        %1036 = vst.msk [vmem:[#allocation3] sm:$0xff] %vm1035, %v940
        %1037 = vst.msk [vmem:[#allocation3 + $0x8] sm:$0xff] %vm1035, %v942
        %1038 = vst.msk [vmem:[#allocation3 + $0x10] sm:$0xff] %vm1035, %v944
        %1039 = vst.msk [vmem:[#allocation3 + $0x18] sm:$0xff] %vm1035, %v946
        %1040 = vst.msk [vmem:[#allocation3 + $0x20] sm:$0xff] %vm1035, %v948
        %1041 = vst.msk [vmem:[#allocation3 + $0x28] sm:$0xff] %vm1035, %v950
        %1042 = vst.msk [vmem:[#allocation3 + $0x30] sm:$0xff] %vm1035, %v952
        %1043 = vst.msk [vmem:[#allocation3 + $0x38] sm:$0xff] %vm1035, %v954
        %1044 = vst.msk [vmem:[#allocation3 + $0x40] sm:$0xff] %vm1035, %v956
        %1045 = vst.msk [vmem:[#allocation3 + $0x48] sm:$0xff] %vm1035, %v958
        %1046 = vst.msk [vmem:[#allocation3 + $0x50] sm:$0xff] %vm1035, %v960
        %1047 = vst.msk [vmem:[#allocation3 + $0x58] sm:$0xff] %vm1035, %v962
        %1048 = vst.msk [vmem:[#allocation3 + $0x60] sm:$0xff] %vm1035, %v964
        %1049 = vst.msk [vmem:[#allocation3 + $0x68] sm:$0xff] %vm1035, %v966
        %1050 = vst.msk [vmem:[#allocation3 + $0x70] sm:$0xff] %vm1035, %v968
        %1051 = vst.msk [vmem:[#allocation3 + $0x78] sm:$0xff] %vm1035, %v970
        %1052 = vst.msk [vmem:[#allocation3 + $0x80] sm:$0xff] %vm1035, %v972
        %1053 = vst.msk [vmem:[#allocation3 + $0x88] sm:$0xff] %vm1035, %v974
        %1054 = vst.msk [vmem:[#allocation3 + $0x90] sm:$0xff] %vm1035, %v976
        %1055 = vst.msk [vmem:[#allocation3 + $0x98] sm:$0xff] %vm1035, %v978
        %1056 = vst.msk [vmem:[#allocation3 + $0xa0] sm:$0xff] %vm1035, %v980
        %1057 = vst.msk [vmem:[#allocation3 + $0xa8] sm:$0xff] %vm1035, %v982
        %1058 = vst.msk [vmem:[#allocation3 + $0xb0] sm:$0xff] %vm1035, %v984
        %1059 = vst.msk [vmem:[#allocation3 + $0xb8] sm:$0xff] %vm1035, %v986
        %1060 = vst.msk [vmem:[#allocation3 + $0xc0] sm:$0xff] %vm1035, %v988
        %1061 = vst.msk [vmem:[#allocation3 + $0xc8] sm:$0xff] %vm1035, %v990
        %1062 = vst.msk [vmem:[#allocation3 + $0xd0] sm:$0xff] %vm1035, %v992
        %1063 = vst.msk [vmem:[#allocation3 + $0xd8] sm:$0xff] %vm1035, %v994
        %1064 = vst.msk [vmem:[#allocation3 + $0xe0] sm:$0xff] %vm1035, %v996
        %1065 = vst.msk [vmem:[#allocation3 + $0xe8] sm:$0xff] %vm1035, %v998
        %1066 = vst.msk [vmem:[#allocation3 + $0xf0] sm:$0xff] %vm1035, %v1000
        %1067 = vst.msk [vmem:[#allocation3 + $0xf8] sm:$0xff] %vm1035, %v1002
        %v1068 = vld [vmem:[%s392 + $0x1] sm:$0xff]
        %v1069 = vld [vmem:[%s392 + $0x9] sm:$0xff]
        %v1070 = vld [vmem:[%s392 + $0x19] sm:$0xff]
        %v1071 = vld [vmem:[%s392 + $0x21] sm:$0xff]
        %v1072 = vld [vmem:[%s392 + $0x31] sm:$0xff]
        %v1073 = vld [vmem:[%s392 + $0x39] sm:$0xff]
        %v1074 = vld [vmem:[%s392 + $0x49] sm:$0xff]
        %v1075 = vld [vmem:[%s392 + $0x51] sm:$0xff]
        %v1076 = vld [vmem:[%s392 + $0x61] sm:$0xff]
        %v1077 = vld [vmem:[%s392 + $0x69] sm:$0xff]
        %v1078 = vld [vmem:[%s392 + $0x79] sm:$0xff]
        %v1079 = vld [vmem:[%s392 + $0x81] sm:$0xff]
        %v1080 = vld [vmem:[%s392 + $0x91] sm:$0xff]
        %v1081 = vld [vmem:[%s392 + $0x99] sm:$0xff]
        %v1082 = vld [vmem:[%s392 + $0xa9] sm:$0xff]
        %v1083 = vld [vmem:[%s392 + $0xb1] sm:$0xff]
        %v1084 = vld [vmem:[%s392 + $0xc1] sm:$0xff]
        %v1085 = vld [vmem:[%s392 + $0xc9] sm:$0xff]
        %v1086 = vld [vmem:[%s392 + $0xd9] sm:$0xff]
        %v1087 = vld [vmem:[%s392 + $0xe1] sm:$0xff]
        %v1088 = vld [vmem:[%s392 + $0xf1] sm:$0xff]
        %v1089 = vld [vmem:[%s392 + $0xf9] sm:$0xff]
        %v1090 = vld [vmem:[%s392 + $0x109] sm:$0xff]
        %v1091 = vld [vmem:[%s392 + $0x111] sm:$0xff]
        %v1092 = vld [vmem:[%s392 + $0x121] sm:$0xff]
        %v1093 = vld [vmem:[%s392 + $0x129] sm:$0xff]
        %v1094 = vld [vmem:[%s392 + $0x139] sm:$0xff]
        %v1095 = vld [vmem:[%s392 + $0x141] sm:$0xff]
        %v1096 = vld [vmem:[%s392 + $0x151] sm:$0xff]
        %v1097 = vld [vmem:[%s392 + $0x159] sm:$0xff]
        %v1098 = vld [vmem:[%s392 + $0x169] sm:$0xff]
        %v1099 = vld [vmem:[%s392 + $0x171] sm:$0xff]
        %1132 = vrot.lane.b32.xlu0 %v1068, 16
        %v1133 = vpop.permute.xlu0 %1132
        %1134 = vrot.lane.b32.xlu0 %v1069, 16
        %v1135 = vpop.permute.xlu0 %1134
        %1136 = vrot.lane.b32.xlu0 %v1070, 16
        %v1137 = vpop.permute.xlu0 %1136
        %1138 = vrot.lane.b32.xlu0 %v1071, 16
        %v1139 = vpop.permute.xlu0 %1138
        %1140 = vrot.lane.b32.xlu0 %v1072, 16
        %v1141 = vpop.permute.xlu0 %1140
        %1142 = vrot.lane.b32.xlu0 %v1073, 16
        %v1143 = vpop.permute.xlu0 %1142
        %1144 = vrot.lane.b32.xlu0 %v1074, 16
        %v1145 = vpop.permute.xlu0 %1144
        %1146 = vrot.lane.b32.xlu0 %v1075, 16
        %v1147 = vpop.permute.xlu0 %1146
        %1148 = vrot.lane.b32.xlu0 %v1076, 16
        %v1149 = vpop.permute.xlu0 %1148
        %1150 = vrot.lane.b32.xlu0 %v1077, 16
        %v1151 = vpop.permute.xlu0 %1150
        %1152 = vrot.lane.b32.xlu0 %v1078, 16
        %v1153 = vpop.permute.xlu0 %1152
        %1154 = vrot.lane.b32.xlu0 %v1079, 16
        %v1155 = vpop.permute.xlu0 %1154
        %1156 = vrot.lane.b32.xlu0 %v1080, 16
        %v1157 = vpop.permute.xlu0 %1156
        %1158 = vrot.lane.b32.xlu0 %v1081, 16
        %v1159 = vpop.permute.xlu0 %1158
        %1160 = vrot.lane.b32.xlu0 %v1082, 16
        %v1161 = vpop.permute.xlu0 %1160
        %1162 = vrot.lane.b32.xlu0 %v1083, 16
        %v1163 = vpop.permute.xlu0 %1162
        %1164 = vrot.lane.b32.xlu0 %v1084, 16
        %v1165 = vpop.permute.xlu0 %1164
        %1166 = vrot.lane.b32.xlu0 %v1085, 16
        %v1167 = vpop.permute.xlu0 %1166
        %1168 = vrot.lane.b32.xlu0 %v1086, 16
        %v1169 = vpop.permute.xlu0 %1168
        %1170 = vrot.lane.b32.xlu0 %v1087, 16
        %v1171 = vpop.permute.xlu0 %1170
        %1172 = vrot.lane.b32.xlu0 %v1088, 16
        %v1173 = vpop.permute.xlu0 %1172
        %1174 = vrot.lane.b32.xlu0 %v1089, 16
        %v1175 = vpop.permute.xlu0 %1174
        %1176 = vrot.lane.b32.xlu0 %v1090, 16
        %v1177 = vpop.permute.xlu0 %1176
        %1178 = vrot.lane.b32.xlu0 %v1091, 16
        %v1179 = vpop.permute.xlu0 %1178
        %1180 = vrot.lane.b32.xlu0 %v1092, 16
        %v1181 = vpop.permute.xlu0 %1180
        %1182 = vrot.lane.b32.xlu0 %v1093, 16
        %v1183 = vpop.permute.xlu0 %1182
        %1184 = vrot.lane.b32.xlu0 %v1094, 16
        %v1185 = vpop.permute.xlu0 %1184
        %1186 = vrot.lane.b32.xlu0 %v1095, 16
        %v1187 = vpop.permute.xlu0 %1186
        %1188 = vrot.lane.b32.xlu0 %v1096, 16
        %v1189 = vpop.permute.xlu0 %1188
        %1190 = vrot.lane.b32.xlu0 %v1097, 16
        %v1191 = vpop.permute.xlu0 %1190
        %1192 = vrot.lane.b32.xlu0 %v1098, 16
        %v1193 = vpop.permute.xlu0 %1192
        %1194 = vrot.lane.b32.xlu0 %v1099, 16
        %v1195 = vpop.permute.xlu0 %1194
        %vm1228 = vcmask 162944
        %1229 = vst.msk [vmem:[#allocation3] sm:$0xff] %vm1228, %v1133
        %1230 = vst.msk [vmem:[#allocation3 + $0x8] sm:$0xff] %vm1228, %v1135
        %1231 = vst.msk [vmem:[#allocation3 + $0x10] sm:$0xff] %vm1228, %v1137
        %1232 = vst.msk [vmem:[#allocation3 + $0x18] sm:$0xff] %vm1228, %v1139
        %1233 = vst.msk [vmem:[#allocation3 + $0x20] sm:$0xff] %vm1228, %v1141
        %1234 = vst.msk [vmem:[#allocation3 + $0x28] sm:$0xff] %vm1228, %v1143
        %1235 = vst.msk [vmem:[#allocation3 + $0x30] sm:$0xff] %vm1228, %v1145
        %1236 = vst.msk [vmem:[#allocation3 + $0x38] sm:$0xff] %vm1228, %v1147
        %1237 = vst.msk [vmem:[#allocation3 + $0x40] sm:$0xff] %vm1228, %v1149
        %1238 = vst.msk [vmem:[#allocation3 + $0x48] sm:$0xff] %vm1228, %v1151
        %1239 = vst.msk [vmem:[#allocation3 + $0x50] sm:$0xff] %vm1228, %v1153
        %1240 = vst.msk [vmem:[#allocation3 + $0x58] sm:$0xff] %vm1228, %v1155
        %1241 = vst.msk [vmem:[#allocation3 + $0x60] sm:$0xff] %vm1228, %v1157
        %1242 = vst.msk [vmem:[#allocation3 + $0x68] sm:$0xff] %vm1228, %v1159
        %1243 = vst.msk [vmem:[#allocation3 + $0x70] sm:$0xff] %vm1228, %v1161
        %1244 = vst.msk [vmem:[#allocation3 + $0x78] sm:$0xff] %vm1228, %v1163
        %1245 = vst.msk [vmem:[#allocation3 + $0x80] sm:$0xff] %vm1228, %v1165
        %1246 = vst.msk [vmem:[#allocation3 + $0x88] sm:$0xff] %vm1228, %v1167
        %1247 = vst.msk [vmem:[#allocation3 + $0x90] sm:$0xff] %vm1228, %v1169
        %1248 = vst.msk [vmem:[#allocation3 + $0x98] sm:$0xff] %vm1228, %v1171
        %1249 = vst.msk [vmem:[#allocation3 + $0xa0] sm:$0xff] %vm1228, %v1173
        %1250 = vst.msk [vmem:[#allocation3 + $0xa8] sm:$0xff] %vm1228, %v1175
        %1251 = vst.msk [vmem:[#allocation3 + $0xb0] sm:$0xff] %vm1228, %v1177
        %1252 = vst.msk [vmem:[#allocation3 + $0xb8] sm:$0xff] %vm1228, %v1179
        %1253 = vst.msk [vmem:[#allocation3 + $0xc0] sm:$0xff] %vm1228, %v1181
        %1254 = vst.msk [vmem:[#allocation3 + $0xc8] sm:$0xff] %vm1228, %v1183
        %1255 = vst.msk [vmem:[#allocation3 + $0xd0] sm:$0xff] %vm1228, %v1185
        %1256 = vst.msk [vmem:[#allocation3 + $0xd8] sm:$0xff] %vm1228, %v1187
        %1257 = vst.msk [vmem:[#allocation3 + $0xe0] sm:$0xff] %vm1228, %v1189
        %1258 = vst.msk [vmem:[#allocation3 + $0xe8] sm:$0xff] %vm1228, %v1191
        %1259 = vst.msk [vmem:[#allocation3 + $0xf0] sm:$0xff] %vm1228, %v1193
        %1260 = vst.msk [vmem:[#allocation3 + $0xf8] sm:$0xff] %vm1228, %v1195
        %v1261 = vld [vmem:[%s392 + $0x2] sm:$0xff]
        %v1262 = vld [vmem:[%s392 + $0xa] sm:$0xff]
        %v1263 = vld [vmem:[%s392 + $0x1a] sm:$0xff]
        %v1264 = vld [vmem:[%s392 + $0x22] sm:$0xff]
        %v1265 = vld [vmem:[%s392 + $0x32] sm:$0xff]
        %v1266 = vld [vmem:[%s392 + $0x3a] sm:$0xff]
        %v1267 = vld [vmem:[%s392 + $0x4a] sm:$0xff]
        %v1268 = vld [vmem:[%s392 + $0x52] sm:$0xff]
        %v1269 = vld [vmem:[%s392 + $0x62] sm:$0xff]
        %v1270 = vld [vmem:[%s392 + $0x6a] sm:$0xff]
        %v1271 = vld [vmem:[%s392 + $0x7a] sm:$0xff]
        %v1272 = vld [vmem:[%s392 + $0x82] sm:$0xff]
        %v1273 = vld [vmem:[%s392 + $0x92] sm:$0xff]
        %v1274 = vld [vmem:[%s392 + $0x9a] sm:$0xff]
        %v1275 = vld [vmem:[%s392 + $0xaa] sm:$0xff]
        %v1276 = vld [vmem:[%s392 + $0xb2] sm:$0xff]
        %v1277 = vld [vmem:[%s392 + $0xc2] sm:$0xff]
        %v1278 = vld [vmem:[%s392 + $0xca] sm:$0xff]
        %v1279 = vld [vmem:[%s392 + $0xda] sm:$0xff]
        %v1280 = vld [vmem:[%s392 + $0xe2] sm:$0xff]
        %v1281 = vld [vmem:[%s392 + $0xf2] sm:$0xff]
        %v1282 = vld [vmem:[%s392 + $0xfa] sm:$0xff]
        %v1283 = vld [vmem:[%s392 + $0x10a] sm:$0xff]
        %v1284 = vld [vmem:[%s392 + $0x112] sm:$0xff]
        %v1285 = vld [vmem:[%s392 + $0x122] sm:$0xff]
        %v1286 = vld [vmem:[%s392 + $0x12a] sm:$0xff]
        %v1287 = vld [vmem:[%s392 + $0x13a] sm:$0xff]
        %v1288 = vld [vmem:[%s392 + $0x142] sm:$0xff]
        %v1289 = vld [vmem:[%s392 + $0x152] sm:$0xff]
        %v1290 = vld [vmem:[%s392 + $0x15a] sm:$0xff]
        %v1291 = vld [vmem:[%s392 + $0x16a] sm:$0xff]
        %v1292 = vld [vmem:[%s392 + $0x172] sm:$0xff]
        %1325 = vrot.lane.b32.xlu0 %v1261, 20
        %v1326 = vpop.permute.xlu0 %1325
        %1327 = vrot.lane.b32.xlu0 %v1262, 20
        %v1328 = vpop.permute.xlu0 %1327
        %1329 = vrot.lane.b32.xlu0 %v1263, 20
        %v1330 = vpop.permute.xlu0 %1329
        %1331 = vrot.lane.b32.xlu0 %v1264, 20
        %v1332 = vpop.permute.xlu0 %1331
        %1333 = vrot.lane.b32.xlu0 %v1265, 20
        %v1334 = vpop.permute.xlu0 %1333
        %1335 = vrot.lane.b32.xlu0 %v1266, 20
        %v1336 = vpop.permute.xlu0 %1335
        %1337 = vrot.lane.b32.xlu0 %v1267, 20
        %v1338 = vpop.permute.xlu0 %1337
        %1339 = vrot.lane.b32.xlu0 %v1268, 20
        %v1340 = vpop.permute.xlu0 %1339
        %1341 = vrot.lane.b32.xlu0 %v1269, 20
        %v1342 = vpop.permute.xlu0 %1341
        %1343 = vrot.lane.b32.xlu0 %v1270, 20
        %v1344 = vpop.permute.xlu0 %1343
        %1345 = vrot.lane.b32.xlu0 %v1271, 20
        %v1346 = vpop.permute.xlu0 %1345
        %1347 = vrot.lane.b32.xlu0 %v1272, 20
        %v1348 = vpop.permute.xlu0 %1347
        %1349 = vrot.lane.b32.xlu0 %v1273, 20
        %v1350 = vpop.permute.xlu0 %1349
        %1351 = vrot.lane.b32.xlu0 %v1274, 20
        %v1352 = vpop.permute.xlu0 %1351
        %1353 = vrot.lane.b32.xlu0 %v1275, 20
        %v1354 = vpop.permute.xlu0 %1353
        %1355 = vrot.lane.b32.xlu0 %v1276, 20
        %v1356 = vpop.permute.xlu0 %1355
        %1357 = vrot.lane.b32.xlu0 %v1277, 20
        %v1358 = vpop.permute.xlu0 %1357
        %1359 = vrot.lane.b32.xlu0 %v1278, 20
        %v1360 = vpop.permute.xlu0 %1359
        %1361 = vrot.lane.b32.xlu0 %v1279, 20
        %v1362 = vpop.permute.xlu0 %1361
        %1363 = vrot.lane.b32.xlu0 %v1280, 20
        %v1364 = vpop.permute.xlu0 %1363
        %1365 = vrot.lane.b32.xlu0 %v1281, 20
        %v1366 = vpop.permute.xlu0 %1365
        %1367 = vrot.lane.b32.xlu0 %v1282, 20
        %v1368 = vpop.permute.xlu0 %1367
        %1369 = vrot.lane.b32.xlu0 %v1283, 20
        %v1370 = vpop.permute.xlu0 %1369
        %1371 = vrot.lane.b32.xlu0 %v1284, 20
        %v1372 = vpop.permute.xlu0 %1371
        %1373 = vrot.lane.b32.xlu0 %v1285, 20
        %v1374 = vpop.permute.xlu0 %1373
        %1375 = vrot.lane.b32.xlu0 %v1286, 20
        %v1376 = vpop.permute.xlu0 %1375
        %1377 = vrot.lane.b32.xlu0 %v1287, 20
        %v1378 = vpop.permute.xlu0 %1377
        %1379 = vrot.lane.b32.xlu0 %v1288, 20
        %v1380 = vpop.permute.xlu0 %1379
        %1381 = vrot.lane.b32.xlu0 %v1289, 20
        %v1382 = vpop.permute.xlu0 %1381
        %1383 = vrot.lane.b32.xlu0 %v1290, 20
        %v1384 = vpop.permute.xlu0 %1383
        %1385 = vrot.lane.b32.xlu0 %v1291, 20
        %v1386 = vpop.permute.xlu0 %1385
        %1387 = vrot.lane.b32.xlu0 %v1292, 20
        %v1388 = vpop.permute.xlu0 %1387
        %vm1421 = vcmask 195744
        %1422 = vst.msk [vmem:[#allocation3] sm:$0xff] %vm1421, %v1326
        %1423 = vst.msk [vmem:[#allocation3 + $0x8] sm:$0xff] %vm1421, %v1328
        %1424 = vst.msk [vmem:[#allocation3 + $0x10] sm:$0xff] %vm1421, %v1330
        %1425 = vst.msk [vmem:[#allocation3 + $0x18] sm:$0xff] %vm1421, %v1332
        %1426 = vst.msk [vmem:[#allocation3 + $0x20] sm:$0xff] %vm1421, %v1334
        %1427 = vst.msk [vmem:[#allocation3 + $0x28] sm:$0xff] %vm1421, %v1336
        %1428 = vst.msk [vmem:[#allocation3 + $0x30] sm:$0xff] %vm1421, %v1338
        %1429 = vst.msk [vmem:[#allocation3 + $0x38] sm:$0xff] %vm1421, %v1340
        %1430 = vst.msk [vmem:[#allocation3 + $0x40] sm:$0xff] %vm1421, %v1342
        %1431 = vst.msk [vmem:[#allocation3 + $0x48] sm:$0xff] %vm1421, %v1344
        %1432 = vst.msk [vmem:[#allocation3 + $0x50] sm:$0xff] %vm1421, %v1346
        %1433 = vst.msk [vmem:[#allocation3 + $0x58] sm:$0xff] %vm1421, %v1348
        %1434 = vst.msk [vmem:[#allocation3 + $0x60] sm:$0xff] %vm1421, %v1350
        %1435 = vst.msk [vmem:[#allocation3 + $0x68] sm:$0xff] %vm1421, %v1352
        %1436 = vst.msk [vmem:[#allocation3 + $0x70] sm:$0xff] %vm1421, %v1354
        %1437 = vst.msk [vmem:[#allocation3 + $0x78] sm:$0xff] %vm1421, %v1356
        %1438 = vst.msk [vmem:[#allocation3 + $0x80] sm:$0xff] %vm1421, %v1358
        %1439 = vst.msk [vmem:[#allocation3 + $0x88] sm:$0xff] %vm1421, %v1360
        %1440 = vst.msk [vmem:[#allocation3 + $0x90] sm:$0xff] %vm1421, %v1362
        %1441 = vst.msk [vmem:[#allocation3 + $0x98] sm:$0xff] %vm1421, %v1364
        %1442 = vst.msk [vmem:[#allocation3 + $0xa0] sm:$0xff] %vm1421, %v1366
        %1443 = vst.msk [vmem:[#allocation3 + $0xa8] sm:$0xff] %vm1421, %v1368
        %1444 = vst.msk [vmem:[#allocation3 + $0xb0] sm:$0xff] %vm1421, %v1370
        %1445 = vst.msk [vmem:[#allocation3 + $0xb8] sm:$0xff] %vm1421, %v1372
        %1446 = vst.msk [vmem:[#allocation3 + $0xc0] sm:$0xff] %vm1421, %v1374
        %1447 = vst.msk [vmem:[#allocation3 + $0xc8] sm:$0xff] %vm1421, %v1376
        %1448 = vst.msk [vmem:[#allocation3 + $0xd0] sm:$0xff] %vm1421, %v1378
        %1449 = vst.msk [vmem:[#allocation3 + $0xd8] sm:$0xff] %vm1421, %v1380
        %1450 = vst.msk [vmem:[#allocation3 + $0xe0] sm:$0xff] %vm1421, %v1382
        %1451 = vst.msk [vmem:[#allocation3 + $0xe8] sm:$0xff] %vm1421, %v1384
        %1452 = vst.msk [vmem:[#allocation3 + $0xf0] sm:$0xff] %vm1421, %v1386
        %1453 = vst.msk [vmem:[#allocation3 + $0xf8] sm:$0xff] %vm1421, %v1388
        %s1454 = scalar_lea.vmem [#allocation2], 48
        %v1455 = vld [vmem:[%s1454] sm:$0xff]
        %v1456 = vld [vmem:[%s1454 + $0x8] sm:$0xff]
        %v1457 = vld [vmem:[%s1454 + $0x18] sm:$0xff]
        %v1458 = vld [vmem:[%s1454 + $0x20] sm:$0xff]
        %v1459 = vld [vmem:[%s1454 + $0x30] sm:$0xff]
        %v1460 = vld [vmem:[%s1454 + $0x38] sm:$0xff]
        %v1461 = vld [vmem:[%s1454 + $0x48] sm:$0xff]
        %v1462 = vld [vmem:[%s1454 + $0x50] sm:$0xff]
        %v1463 = vld [vmem:[%s1454 + $0x60] sm:$0xff]
        %v1464 = vld [vmem:[%s1454 + $0x68] sm:$0xff]
        %v1465 = vld [vmem:[%s1454 + $0x78] sm:$0xff]
        %v1466 = vld [vmem:[%s1454 + $0x80] sm:$0xff]
        %v1467 = vld [vmem:[%s1454 + $0x90] sm:$0xff]
        %v1468 = vld [vmem:[%s1454 + $0x98] sm:$0xff]
        %v1469 = vld [vmem:[%s1454 + $0xa8] sm:$0xff]
        %v1470 = vld [vmem:[%s1454 + $0xb0] sm:$0xff]
        %v1471 = vld [vmem:[%s1454 + $0xc0] sm:$0xff]
        %v1472 = vld [vmem:[%s1454 + $0xc8] sm:$0xff]
        %v1473 = vld [vmem:[%s1454 + $0xd8] sm:$0xff]
        %v1474 = vld [vmem:[%s1454 + $0xe0] sm:$0xff]
        %v1475 = vld [vmem:[%s1454 + $0xf0] sm:$0xff]
        %v1476 = vld [vmem:[%s1454 + $0xf8] sm:$0xff]
        %v1477 = vld [vmem:[%s1454 + $0x108] sm:$0xff]
        %v1478 = vld [vmem:[%s1454 + $0x110] sm:$0xff]
        %v1479 = vld [vmem:[%s1454 + $0x120] sm:$0xff]
        %v1480 = vld [vmem:[%s1454 + $0x128] sm:$0xff]
        %v1481 = vld [vmem:[%s1454 + $0x138] sm:$0xff]
        %v1482 = vld [vmem:[%s1454 + $0x140] sm:$0xff]
        %v1483 = vld [vmem:[%s1454 + $0x150] sm:$0xff]
        %v1484 = vld [vmem:[%s1454 + $0x158] sm:$0xff]
        %v1485 = vld [vmem:[%s1454 + $0x168] sm:$0xff]
        %v1486 = vld [vmem:[%s1454 + $0x170] sm:$0xff]
        %1519 = vrot.lane.b32.xlu0 %v1455, 24
        %v1520 = vpop.permute.xlu0 %1519
        %1521 = vrot.lane.b32.xlu0 %v1456, 24
        %v1522 = vpop.permute.xlu0 %1521
        %1523 = vrot.lane.b32.xlu0 %v1457, 24
        %v1524 = vpop.permute.xlu0 %1523
        %1525 = vrot.lane.b32.xlu0 %v1458, 24
        %v1526 = vpop.permute.xlu0 %1525
        %1527 = vrot.lane.b32.xlu0 %v1459, 24
        %v1528 = vpop.permute.xlu0 %1527
        %1529 = vrot.lane.b32.xlu0 %v1460, 24
        %v1530 = vpop.permute.xlu0 %1529
        %1531 = vrot.lane.b32.xlu0 %v1461, 24
        %v1532 = vpop.permute.xlu0 %1531
        %1533 = vrot.lane.b32.xlu0 %v1462, 24
        %v1534 = vpop.permute.xlu0 %1533
        %1535 = vrot.lane.b32.xlu0 %v1463, 24
        %v1536 = vpop.permute.xlu0 %1535
        %1537 = vrot.lane.b32.xlu0 %v1464, 24
        %v1538 = vpop.permute.xlu0 %1537
        %1539 = vrot.lane.b32.xlu0 %v1465, 24
        %v1540 = vpop.permute.xlu0 %1539
        %1541 = vrot.lane.b32.xlu0 %v1466, 24
        %v1542 = vpop.permute.xlu0 %1541
        %1543 = vrot.lane.b32.xlu0 %v1467, 24
        %v1544 = vpop.permute.xlu0 %1543
        %1545 = vrot.lane.b32.xlu0 %v1468, 24
        %v1546 = vpop.permute.xlu0 %1545
        %1547 = vrot.lane.b32.xlu0 %v1469, 24
        %v1548 = vpop.permute.xlu0 %1547
        %1549 = vrot.lane.b32.xlu0 %v1470, 24
        %v1550 = vpop.permute.xlu0 %1549
        %1551 = vrot.lane.b32.xlu0 %v1471, 24
        %v1552 = vpop.permute.xlu0 %1551
        %1553 = vrot.lane.b32.xlu0 %v1472, 24
        %v1554 = vpop.permute.xlu0 %1553
        %1555 = vrot.lane.b32.xlu0 %v1473, 24
        %v1556 = vpop.permute.xlu0 %1555
        %1557 = vrot.lane.b32.xlu0 %v1474, 24
        %v1558 = vpop.permute.xlu0 %1557
        %1559 = vrot.lane.b32.xlu0 %v1475, 24
        %v1560 = vpop.permute.xlu0 %1559
        %1561 = vrot.lane.b32.xlu0 %v1476, 24
        %v1562 = vpop.permute.xlu0 %1561
        %1563 = vrot.lane.b32.xlu0 %v1477, 24
        %v1564 = vpop.permute.xlu0 %1563
        %1565 = vrot.lane.b32.xlu0 %v1478, 24
        %v1566 = vpop.permute.xlu0 %1565
        %1567 = vrot.lane.b32.xlu0 %v1479, 24
        %v1568 = vpop.permute.xlu0 %1567
        %1569 = vrot.lane.b32.xlu0 %v1480, 24
        %v1570 = vpop.permute.xlu0 %1569
        %1571 = vrot.lane.b32.xlu0 %v1481, 24
        %v1572 = vpop.permute.xlu0 %1571
        %1573 = vrot.lane.b32.xlu0 %v1482, 24
        %v1574 = vpop.permute.xlu0 %1573
        %1575 = vrot.lane.b32.xlu0 %v1483, 24
        %v1576 = vpop.permute.xlu0 %1575
        %1577 = vrot.lane.b32.xlu0 %v1484, 24
        %v1578 = vpop.permute.xlu0 %1577
        %1579 = vrot.lane.b32.xlu0 %v1485, 24
        %v1580 = vpop.permute.xlu0 %1579
        %1581 = vrot.lane.b32.xlu0 %v1486, 24
        %v1582 = vpop.permute.xlu0 %1581
        %vm1615 = vcmask 228544
        %1616 = vst.msk [vmem:[#allocation3] sm:$0xff] %vm1615, %v1520
        %1617 = vst.msk [vmem:[#allocation3 + $0x8] sm:$0xff] %vm1615, %v1522
        %1618 = vst.msk [vmem:[#allocation3 + $0x10] sm:$0xff] %vm1615, %v1524
        %1619 = vst.msk [vmem:[#allocation3 + $0x18] sm:$0xff] %vm1615, %v1526
        %1620 = vst.msk [vmem:[#allocation3 + $0x20] sm:$0xff] %vm1615, %v1528
        %1621 = vst.msk [vmem:[#allocation3 + $0x28] sm:$0xff] %vm1615, %v1530
        %1622 = vst.msk [vmem:[#allocation3 + $0x30] sm:$0xff] %vm1615, %v1532
        %1623 = vst.msk [vmem:[#allocation3 + $0x38] sm:$0xff] %vm1615, %v1534
        %1624 = vst.msk [vmem:[#allocation3 + $0x40] sm:$0xff] %vm1615, %v1536
        %1625 = vst.msk [vmem:[#allocation3 + $0x48] sm:$0xff] %vm1615, %v1538
        %1626 = vst.msk [vmem:[#allocation3 + $0x50] sm:$0xff] %vm1615, %v1540
        %1627 = vst.msk [vmem:[#allocation3 + $0x58] sm:$0xff] %vm1615, %v1542
        %1628 = vst.msk [vmem:[#allocation3 + $0x60] sm:$0xff] %vm1615, %v1544
        %1629 = vst.msk [vmem:[#allocation3 + $0x68] sm:$0xff] %vm1615, %v1546
        %1630 = vst.msk [vmem:[#allocation3 + $0x70] sm:$0xff] %vm1615, %v1548
        %1631 = vst.msk [vmem:[#allocation3 + $0x78] sm:$0xff] %vm1615, %v1550
        %1632 = vst.msk [vmem:[#allocation3 + $0x80] sm:$0xff] %vm1615, %v1552
        %1633 = vst.msk [vmem:[#allocation3 + $0x88] sm:$0xff] %vm1615, %v1554
        %1634 = vst.msk [vmem:[#allocation3 + $0x90] sm:$0xff] %vm1615, %v1556
        %1635 = vst.msk [vmem:[#allocation3 + $0x98] sm:$0xff] %vm1615, %v1558
        %1636 = vst.msk [vmem:[#allocation3 + $0xa0] sm:$0xff] %vm1615, %v1560
        %1637 = vst.msk [vmem:[#allocation3 + $0xa8] sm:$0xff] %vm1615, %v1562
        %1638 = vst.msk [vmem:[#allocation3 + $0xb0] sm:$0xff] %vm1615, %v1564
        %1639 = vst.msk [vmem:[#allocation3 + $0xb8] sm:$0xff] %vm1615, %v1566
        %1640 = vst.msk [vmem:[#allocation3 + $0xc0] sm:$0xff] %vm1615, %v1568
        %1641 = vst.msk [vmem:[#allocation3 + $0xc8] sm:$0xff] %vm1615, %v1570
        %1642 = vst.msk [vmem:[#allocation3 + $0xd0] sm:$0xff] %vm1615, %v1572
        %1643 = vst.msk [vmem:[#allocation3 + $0xd8] sm:$0xff] %vm1615, %v1574
        %1644 = vst.msk [vmem:[#allocation3 + $0xe0] sm:$0xff] %vm1615, %v1576
        %1645 = vst.msk [vmem:[#allocation3 + $0xe8] sm:$0xff] %vm1615, %v1578
        %1646 = vst.msk [vmem:[#allocation3 + $0xf0] sm:$0xff] %vm1615, %v1580
        %1647 = vst.msk [vmem:[#allocation3 + $0xf8] sm:$0xff] %vm1615, %v1582
        %v1648 = vld [vmem:[%s1454 + $0x1] sm:$0xff]
        %v1649 = vld [vmem:[%s1454 + $0x9] sm:$0xff]
        %v1650 = vld [vmem:[%s1454 + $0x19] sm:$0xff]
        %v1651 = vld [vmem:[%s1454 + $0x21] sm:$0xff]
        %v1652 = vld [vmem:[%s1454 + $0x31] sm:$0xff]
        %v1653 = vld [vmem:[%s1454 + $0x39] sm:$0xff]
        %v1654 = vld [vmem:[%s1454 + $0x49] sm:$0xff]
        %v1655 = vld [vmem:[%s1454 + $0x51] sm:$0xff]
        %v1656 = vld [vmem:[%s1454 + $0x61] sm:$0xff]
        %v1657 = vld [vmem:[%s1454 + $0x69] sm:$0xff]
        %v1658 = vld [vmem:[%s1454 + $0x79] sm:$0xff]
        %v1659 = vld [vmem:[%s1454 + $0x81] sm:$0xff]
        %v1660 = vld [vmem:[%s1454 + $0x91] sm:$0xff]
        %v1661 = vld [vmem:[%s1454 + $0x99] sm:$0xff]
        %v1662 = vld [vmem:[%s1454 + $0xa9] sm:$0xff]
        %v1663 = vld [vmem:[%s1454 + $0xb1] sm:$0xff]
        %v1664 = vld [vmem:[%s1454 + $0xc1] sm:$0xff]
        %v1665 = vld [vmem:[%s1454 + $0xc9] sm:$0xff]
        %v1666 = vld [vmem:[%s1454 + $0xd9] sm:$0xff]
        %v1667 = vld [vmem:[%s1454 + $0xe1] sm:$0xff]
        %v1668 = vld [vmem:[%s1454 + $0xf1] sm:$0xff]
        %v1669 = vld [vmem:[%s1454 + $0xf9] sm:$0xff]
        %v1670 = vld [vmem:[%s1454 + $0x109] sm:$0xff]
        %v1671 = vld [vmem:[%s1454 + $0x111] sm:$0xff]
        %v1672 = vld [vmem:[%s1454 + $0x121] sm:$0xff]
        %v1673 = vld [vmem:[%s1454 + $0x129] sm:$0xff]
        %v1674 = vld [vmem:[%s1454 + $0x139] sm:$0xff]
        %v1675 = vld [vmem:[%s1454 + $0x141] sm:$0xff]
        %v1676 = vld [vmem:[%s1454 + $0x151] sm:$0xff]
        %v1677 = vld [vmem:[%s1454 + $0x159] sm:$0xff]
        %v1678 = vld [vmem:[%s1454 + $0x169] sm:$0xff]
        %v1679 = vld [vmem:[%s1454 + $0x171] sm:$0xff]
        %1712 = vrot.lane.b32.xlu0 %v1648, 28
        %v1713 = vpop.permute.xlu0 %1712
        %1714 = vrot.lane.b32.xlu0 %v1649, 28
        %v1715 = vpop.permute.xlu0 %1714
        %1716 = vrot.lane.b32.xlu0 %v1650, 28
        %v1717 = vpop.permute.xlu0 %1716
        %1718 = vrot.lane.b32.xlu0 %v1651, 28
        %v1719 = vpop.permute.xlu0 %1718
        %1720 = vrot.lane.b32.xlu0 %v1652, 28
        %v1721 = vpop.permute.xlu0 %1720
        %1722 = vrot.lane.b32.xlu0 %v1653, 28
        %v1723 = vpop.permute.xlu0 %1722
        %1724 = vrot.lane.b32.xlu0 %v1654, 28
        %v1725 = vpop.permute.xlu0 %1724
        %1726 = vrot.lane.b32.xlu0 %v1655, 28
        %v1727 = vpop.permute.xlu0 %1726
        %1728 = vrot.lane.b32.xlu0 %v1656, 28
        %v1729 = vpop.permute.xlu0 %1728
        %1730 = vrot.lane.b32.xlu0 %v1657, 28
        %v1731 = vpop.permute.xlu0 %1730
        %1732 = vrot.lane.b32.xlu0 %v1658, 28
        %v1733 = vpop.permute.xlu0 %1732
        %1734 = vrot.lane.b32.xlu0 %v1659, 28
        %v1735 = vpop.permute.xlu0 %1734
        %1736 = vrot.lane.b32.xlu0 %v1660, 28
        %v1737 = vpop.permute.xlu0 %1736
        %1738 = vrot.lane.b32.xlu0 %v1661, 28
        %v1739 = vpop.permute.xlu0 %1738
        %1740 = vrot.lane.b32.xlu0 %v1662, 28
        %v1741 = vpop.permute.xlu0 %1740
        %1742 = vrot.lane.b32.xlu0 %v1663, 28
        %v1743 = vpop.permute.xlu0 %1742
        %1744 = vrot.lane.b32.xlu0 %v1664, 28
        %v1745 = vpop.permute.xlu0 %1744
        %1746 = vrot.lane.b32.xlu0 %v1665, 28
        %v1747 = vpop.permute.xlu0 %1746
        %1748 = vrot.lane.b32.xlu0 %v1666, 28
        %v1749 = vpop.permute.xlu0 %1748
        %1750 = vrot.lane.b32.xlu0 %v1667, 28
        %v1751 = vpop.permute.xlu0 %1750
        %1752 = vrot.lane.b32.xlu0 %v1668, 28
        %v1753 = vpop.permute.xlu0 %1752
        %1754 = vrot.lane.b32.xlu0 %v1669, 28
        %v1755 = vpop.permute.xlu0 %1754
        %1756 = vrot.lane.b32.xlu0 %v1670, 28
        %v1757 = vpop.permute.xlu0 %1756
        %1758 = vrot.lane.b32.xlu0 %v1671, 28
        %v1759 = vpop.permute.xlu0 %1758
        %1760 = vrot.lane.b32.xlu0 %v1672, 28
        %v1761 = vpop.permute.xlu0 %1760
        %1762 = vrot.lane.b32.xlu0 %v1673, 28
        %v1763 = vpop.permute.xlu0 %1762
        %1764 = vrot.lane.b32.xlu0 %v1674, 28
        %v1765 = vpop.permute.xlu0 %1764
        %1766 = vrot.lane.b32.xlu0 %v1675, 28
        %v1767 = vpop.permute.xlu0 %1766
        %1768 = vrot.lane.b32.xlu0 %v1676, 28
        %v1769 = vpop.permute.xlu0 %1768
        %1770 = vrot.lane.b32.xlu0 %v1677, 28
        %v1771 = vpop.permute.xlu0 %1770
        %1772 = vrot.lane.b32.xlu0 %v1678, 28
        %v1773 = vpop.permute.xlu0 %1772
        %1774 = vrot.lane.b32.xlu0 %v1679, 28
        %v1775 = vpop.permute.xlu0 %1774
        %vm1808 = vcmask 261344
        %1809 = vst.msk [vmem:[#allocation3] sm:$0xff] %vm1808, %v1713
        %1810 = vst.msk [vmem:[#allocation3 + $0x8] sm:$0xff] %vm1808, %v1715
        %1811 = vst.msk [vmem:[#allocation3 + $0x10] sm:$0xff] %vm1808, %v1717
        %1812 = vst.msk [vmem:[#allocation3 + $0x18] sm:$0xff] %vm1808, %v1719
        %1813 = vst.msk [vmem:[#allocation3 + $0x20] sm:$0xff] %vm1808, %v1721
        %1814 = vst.msk [vmem:[#allocation3 + $0x28] sm:$0xff] %vm1808, %v1723
        %1815 = vst.msk [vmem:[#allocation3 + $0x30] sm:$0xff] %vm1808, %v1725
        %1816 = vst.msk [vmem:[#allocation3 + $0x38] sm:$0xff] %vm1808, %v1727
        %1817 = vst.msk [vmem:[#allocation3 + $0x40] sm:$0xff] %vm1808, %v1729
        %1818 = vst.msk [vmem:[#allocation3 + $0x48] sm:$0xff] %vm1808, %v1731
        %1819 = vst.msk [vmem:[#allocation3 + $0x50] sm:$0xff] %vm1808, %v1733
        %1820 = vst.msk [vmem:[#allocation3 + $0x58] sm:$0xff] %vm1808, %v1735
        %1821 = vst.msk [vmem:[#allocation3 + $0x60] sm:$0xff] %vm1808, %v1737
        %1822 = vst.msk [vmem:[#allocation3 + $0x68] sm:$0xff] %vm1808, %v1739
        %1823 = vst.msk [vmem:[#allocation3 + $0x70] sm:$0xff] %vm1808, %v1741
        %1824 = vst.msk [vmem:[#allocation3 + $0x78] sm:$0xff] %vm1808, %v1743
        %1825 = vst.msk [vmem:[#allocation3 + $0x80] sm:$0xff] %vm1808, %v1745
        %1826 = vst.msk [vmem:[#allocation3 + $0x88] sm:$0xff] %vm1808, %v1747
        %1827 = vst.msk [vmem:[#allocation3 + $0x90] sm:$0xff] %vm1808, %v1749
        %1828 = vst.msk [vmem:[#allocation3 + $0x98] sm:$0xff] %vm1808, %v1751
        %1829 = vst.msk [vmem:[#allocation3 + $0xa0] sm:$0xff] %vm1808, %v1753
        %1830 = vst.msk [vmem:[#allocation3 + $0xa8] sm:$0xff] %vm1808, %v1755
        %1831 = vst.msk [vmem:[#allocation3 + $0xb0] sm:$0xff] %vm1808, %v1757
        %1832 = vst.msk [vmem:[#allocation3 + $0xb8] sm:$0xff] %vm1808, %v1759
        %1833 = vst.msk [vmem:[#allocation3 + $0xc0] sm:$0xff] %vm1808, %v1761
        %1834 = vst.msk [vmem:[#allocation3 + $0xc8] sm:$0xff] %vm1808, %v1763
        %1835 = vst.msk [vmem:[#allocation3 + $0xd0] sm:$0xff] %vm1808, %v1765
        %1836 = vst.msk [vmem:[#allocation3 + $0xd8] sm:$0xff] %vm1808, %v1767
        %1837 = vst.msk [vmem:[#allocation3 + $0xe0] sm:$0xff] %vm1808, %v1769
        %1838 = vst.msk [vmem:[#allocation3 + $0xe8] sm:$0xff] %vm1808, %v1771
        %1839 = vst.msk [vmem:[#allocation3 + $0xf0] sm:$0xff] %vm1808, %v1773
        %1840 = vst.msk [vmem:[#allocation3 + $0xf8] sm:$0xff] %vm1808, %v1775
        %v1841 = vld [vmem:[%s1454 + $0x2] sm:$0xff]
        %v1842 = vld [vmem:[%s1454 + $0xa] sm:$0xff]
        %v1843 = vld [vmem:[%s1454 + $0x1a] sm:$0xff]
        %v1844 = vld [vmem:[%s1454 + $0x22] sm:$0xff]
        %v1845 = vld [vmem:[%s1454 + $0x32] sm:$0xff]
        %v1846 = vld [vmem:[%s1454 + $0x3a] sm:$0xff]
        %v1847 = vld [vmem:[%s1454 + $0x4a] sm:$0xff]
        %v1848 = vld [vmem:[%s1454 + $0x52] sm:$0xff]
        %v1849 = vld [vmem:[%s1454 + $0x62] sm:$0xff]
        %v1850 = vld [vmem:[%s1454 + $0x6a] sm:$0xff]
        %v1851 = vld [vmem:[%s1454 + $0x7a] sm:$0xff]
        %v1852 = vld [vmem:[%s1454 + $0x82] sm:$0xff]
        %v1853 = vld [vmem:[%s1454 + $0x92] sm:$0xff]
        %v1854 = vld [vmem:[%s1454 + $0x9a] sm:$0xff]
        %v1855 = vld [vmem:[%s1454 + $0xaa] sm:$0xff]
        %v1856 = vld [vmem:[%s1454 + $0xb2] sm:$0xff]
        %v1857 = vld [vmem:[%s1454 + $0xc2] sm:$0xff]
        %v1858 = vld [vmem:[%s1454 + $0xca] sm:$0xff]
        %v1859 = vld [vmem:[%s1454 + $0xda] sm:$0xff]
        %v1860 = vld [vmem:[%s1454 + $0xe2] sm:$0xff]
        %v1861 = vld [vmem:[%s1454 + $0xf2] sm:$0xff]
        %v1862 = vld [vmem:[%s1454 + $0xfa] sm:$0xff]
        %v1863 = vld [vmem:[%s1454 + $0x10a] sm:$0xff]
        %v1864 = vld [vmem:[%s1454 + $0x112] sm:$0xff]
        %v1865 = vld [vmem:[%s1454 + $0x122] sm:$0xff]
        %v1866 = vld [vmem:[%s1454 + $0x12a] sm:$0xff]
        %v1867 = vld [vmem:[%s1454 + $0x13a] sm:$0xff]
        %v1868 = vld [vmem:[%s1454 + $0x142] sm:$0xff]
        %v1869 = vld [vmem:[%s1454 + $0x152] sm:$0xff]
        %v1870 = vld [vmem:[%s1454 + $0x15a] sm:$0xff]
        %v1871 = vld [vmem:[%s1454 + $0x16a] sm:$0xff]
        %v1872 = vld [vmem:[%s1454 + $0x172] sm:$0xff]
        %1905 = vrot.lane.b32.xlu0 %v1841, 32
        %v1906 = vpop.permute.xlu0 %1905
        %1907 = vrot.lane.b32.xlu0 %v1842, 32
        %v1908 = vpop.permute.xlu0 %1907
        %1909 = vrot.lane.b32.xlu0 %v1843, 32
        %v1910 = vpop.permute.xlu0 %1909
        %1911 = vrot.lane.b32.xlu0 %v1844, 32
        %v1912 = vpop.permute.xlu0 %1911
        %1913 = vrot.lane.b32.xlu0 %v1845, 32
        %v1914 = vpop.permute.xlu0 %1913
        %1915 = vrot.lane.b32.xlu0 %v1846, 32
        %v1916 = vpop.permute.xlu0 %1915
        %1917 = vrot.lane.b32.xlu0 %v1847, 32
        %v1918 = vpop.permute.xlu0 %1917
        %1919 = vrot.lane.b32.xlu0 %v1848, 32
        %v1920 = vpop.permute.xlu0 %1919
        %1921 = vrot.lane.b32.xlu0 %v1849, 32
        %v1922 = vpop.permute.xlu0 %1921
        %1923 = vrot.lane.b32.xlu0 %v1850, 32
        %v1924 = vpop.permute.xlu0 %1923
        %1925 = vrot.lane.b32.xlu0 %v1851, 32
        %v1926 = vpop.permute.xlu0 %1925
        %1927 = vrot.lane.b32.xlu0 %v1852, 32
        %v1928 = vpop.permute.xlu0 %1927
        %1929 = vrot.lane.b32.xlu0 %v1853, 32
        %v1930 = vpop.permute.xlu0 %1929
        %1931 = vrot.lane.b32.xlu0 %v1854, 32
        %v1932 = vpop.permute.xlu0 %1931
        %1933 = vrot.lane.b32.xlu0 %v1855, 32
        %v1934 = vpop.permute.xlu0 %1933
        %1935 = vrot.lane.b32.xlu0 %v1856, 32
        %v1936 = vpop.permute.xlu0 %1935
        %1937 = vrot.lane.b32.xlu0 %v1857, 32
        %v1938 = vpop.permute.xlu0 %1937
        %1939 = vrot.lane.b32.xlu0 %v1858, 32
        %v1940 = vpop.permute.xlu0 %1939
        %1941 = vrot.lane.b32.xlu0 %v1859, 32
        %v1942 = vpop.permute.xlu0 %1941
        %1943 = vrot.lane.b32.xlu0 %v1860, 32
        %v1944 = vpop.permute.xlu0 %1943
        %1945 = vrot.lane.b32.xlu0 %v1861, 32
        %v1946 = vpop.permute.xlu0 %1945
        %1947 = vrot.lane.b32.xlu0 %v1862, 32
        %v1948 = vpop.permute.xlu0 %1947
        %1949 = vrot.lane.b32.xlu0 %v1863, 32
        %v1950 = vpop.permute.xlu0 %1949
        %1951 = vrot.lane.b32.xlu0 %v1864, 32
        %v1952 = vpop.permute.xlu0 %1951
        %1953 = vrot.lane.b32.xlu0 %v1865, 32
        %v1954 = vpop.permute.xlu0 %1953
        %1955 = vrot.lane.b32.xlu0 %v1866, 32
        %v1956 = vpop.permute.xlu0 %1955
        %1957 = vrot.lane.b32.xlu0 %v1867, 32
        %v1958 = vpop.permute.xlu0 %1957
        %1959 = vrot.lane.b32.xlu0 %v1868, 32
        %v1960 = vpop.permute.xlu0 %1959
        %1961 = vrot.lane.b32.xlu0 %v1869, 32
        %v1962 = vpop.permute.xlu0 %1961
        %1963 = vrot.lane.b32.xlu0 %v1870, 32
        %v1964 = vpop.permute.xlu0 %1963
        %1965 = vrot.lane.b32.xlu0 %v1871, 32
        %v1966 = vpop.permute.xlu0 %1965
        %1967 = vrot.lane.b32.xlu0 %v1872, 32
        %v1968 = vpop.permute.xlu0 %1967
        %vm2001 = vcmask 294144
        %2002 = vst.msk [vmem:[#allocation3] sm:$0xff] %vm2001, %v1906
        %2003 = vst.msk [vmem:[#allocation3 + $0x8] sm:$0xff] %vm2001, %v1908
        %2004 = vst.msk [vmem:[#allocation3 + $0x10] sm:$0xff] %vm2001, %v1910
        %2005 = vst.msk [vmem:[#allocation3 + $0x18] sm:$0xff] %vm2001, %v1912
        %2006 = vst.msk [vmem:[#allocation3 + $0x20] sm:$0xff] %vm2001, %v1914
        %2007 = vst.msk [vmem:[#allocation3 + $0x28] sm:$0xff] %vm2001, %v1916
        %2008 = vst.msk [vmem:[#allocation3 + $0x30] sm:$0xff] %vm2001, %v1918
        %2009 = vst.msk [vmem:[#allocation3 + $0x38] sm:$0xff] %vm2001, %v1920
        %2010 = vst.msk [vmem:[#allocation3 + $0x40] sm:$0xff] %vm2001, %v1922
        %2011 = vst.msk [vmem:[#allocation3 + $0x48] sm:$0xff] %vm2001, %v1924
        %2012 = vst.msk [vmem:[#allocation3 + $0x50] sm:$0xff] %vm2001, %v1926
        %2013 = vst.msk [vmem:[#allocation3 + $0x58] sm:$0xff] %vm2001, %v1928
        %2014 = vst.msk [vmem:[#allocation3 + $0x60] sm:$0xff] %vm2001, %v1930
        %2015 = vst.msk [vmem:[#allocation3 + $0x68] sm:$0xff] %vm2001, %v1932
        %2016 = vst.msk [vmem:[#allocation3 + $0x70] sm:$0xff] %vm2001, %v1934
        %2017 = vst.msk [vmem:[#allocation3 + $0x78] sm:$0xff] %vm2001, %v1936
        %2018 = vst.msk [vmem:[#allocation3 + $0x80] sm:$0xff] %vm2001, %v1938
        %2019 = vst.msk [vmem:[#allocation3 + $0x88] sm:$0xff] %vm2001, %v1940
        %2020 = vst.msk [vmem:[#allocation3 + $0x90] sm:$0xff] %vm2001, %v1942
        %2021 = vst.msk [vmem:[#allocation3 + $0x98] sm:$0xff] %vm2001, %v1944
        %2022 = vst.msk [vmem:[#allocation3 + $0xa0] sm:$0xff] %vm2001, %v1946
        %2023 = vst.msk [vmem:[#allocation3 + $0xa8] sm:$0xff] %vm2001, %v1948
        %2024 = vst.msk [vmem:[#allocation3 + $0xb0] sm:$0xff] %vm2001, %v1950
        %2025 = vst.msk [vmem:[#allocation3 + $0xb8] sm:$0xff] %vm2001, %v1952
        %2026 = vst.msk [vmem:[#allocation3 + $0xc0] sm:$0xff] %vm2001, %v1954
        %2027 = vst.msk [vmem:[#allocation3 + $0xc8] sm:$0xff] %vm2001, %v1956
        %2028 = vst.msk [vmem:[#allocation3 + $0xd0] sm:$0xff] %vm2001, %v1958
        %2029 = vst.msk [vmem:[#allocation3 + $0xd8] sm:$0xff] %vm2001, %v1960
        %2030 = vst.msk [vmem:[#allocation3 + $0xe0] sm:$0xff] %vm2001, %v1962
        %2031 = vst.msk [vmem:[#allocation3 + $0xe8] sm:$0xff] %vm2001, %v1964
        %2032 = vst.msk [vmem:[#allocation3 + $0xf0] sm:$0xff] %vm2001, %v1966
        %2033 = vst.msk [vmem:[#allocation3 + $0xf8] sm:$0xff] %vm2001, %v1968
        %v2034 = vld [vmem:[#allocation3] sm:$0xff]
        %v2035 = vld [vmem:[#allocation3 + $0x8] sm:$0xff]
        %v2036 = vld [vmem:[#allocation3 + $0x10] sm:$0xff]
        %v2037 = vld [vmem:[#allocation3 + $0x18] sm:$0xff]
        %v2038 = vld [vmem:[#allocation3 + $0x20] sm:$0xff]
        %v2039 = vld [vmem:[#allocation3 + $0x28] sm:$0xff]
        %v2040 = vld [vmem:[#allocation3 + $0x30] sm:$0xff]
        %v2041 = vld [vmem:[#allocation3 + $0x38] sm:$0xff]
        %v2042 = vld [vmem:[#allocation3 + $0x40] sm:$0xff]
        %v2043 = vld [vmem:[#allocation3 + $0x48] sm:$0xff]
        %v2044 = vld [vmem:[#allocation3 + $0x50] sm:$0xff]
        %v2045 = vld [vmem:[#allocation3 + $0x58] sm:$0xff]
        %v2046 = vld [vmem:[#allocation3 + $0x60] sm:$0xff]
        %v2047 = vld [vmem:[#allocation3 + $0x68] sm:$0xff]
        %v2048 = vld [vmem:[#allocation3 + $0x70] sm:$0xff]
        %v2049 = vld [vmem:[#allocation3 + $0x78] sm:$0xff]
        %v2050 = vld [vmem:[#allocation3 + $0x80] sm:$0xff]
        %v2051 = vld [vmem:[#allocation3 + $0x88] sm:$0xff]
        %v2052 = vld [vmem:[#allocation3 + $0x90] sm:$0xff]
        %v2053 = vld [vmem:[#allocation3 + $0x98] sm:$0xff]
        %v2054 = vld [vmem:[#allocation3 + $0xa0] sm:$0xff]
        %v2055 = vld [vmem:[#allocation3 + $0xa8] sm:$0xff]
        %v2056 = vld [vmem:[#allocation3 + $0xb0] sm:$0xff]
        %v2057 = vld [vmem:[#allocation3 + $0xb8] sm:$0xff]
        %v2058 = vld [vmem:[#allocation3 + $0xc0] sm:$0xff]
        %v2059 = vld [vmem:[#allocation3 + $0xc8] sm:$0xff]
        %v2060 = vld [vmem:[#allocation3 + $0xd0] sm:$0xff]
        %v2061 = vld [vmem:[#allocation3 + $0xd8] sm:$0xff]
        %v2062 = vld [vmem:[#allocation3 + $0xe0] sm:$0xff]
        %v2063 = vld [vmem:[#allocation3 + $0xe8] sm:$0xff]
        %v2064 = vld [vmem:[#allocation3 + $0xf0] sm:$0xff]
        %v2065 = vld [vmem:[#allocation3 + $0xf8] sm:$0xff]
        %v2066 = vld [vmem:[%s1] sm:$0xff]
        %v2067 = vld [vmem:[%s1 + $0x8] sm:$0xff]
        %v2068 = vld [vmem:[%s1 + $0x10] sm:$0xff]
        %v2069 = vld [vmem:[%s1 + $0x18] sm:$0xff]
        %v2070 = vld [vmem:[%s1 + $0x20] sm:$0xf]
        %vm2071 = vcmask 293888
        %v2073 = vsel %vm2071, %v2034, 0
        %v2076 = vsel %vm2071, %v2035, 0
        %v2079 = vsel %vm2071, %v2036, 0
        %v2082 = vsel %vm2071, %v2037, 0
        %v2085 = vsel %vm2071, %v2038, 0
        %v2088 = vsel %vm2071, %v2039, 0
        %v2091 = vsel %vm2071, %v2040, 0
        %v2094 = vsel %vm2071, %v2041, 0
        %v2097 = vsel %vm2071, %v2042, 0
        %v2100 = vsel %vm2071, %v2043, 0
        %v2103 = vsel %vm2071, %v2044, 0
        %v2106 = vsel %vm2071, %v2045, 0
        %v2109 = vsel %vm2071, %v2046, 0
        %v2112 = vsel %vm2071, %v2047, 0
        %v2115 = vsel %vm2071, %v2048, 0
        %v2118 = vsel %vm2071, %v2049, 0
        %v2121 = vsel %vm2071, %v2050, 0
        %v2124 = vsel %vm2071, %v2051, 0
        %v2127 = vsel %vm2071, %v2052, 0
        %v2130 = vsel %vm2071, %v2053, 0
        %v2133 = vsel %vm2071, %v2054, 0
        %v2136 = vsel %vm2071, %v2055, 0
        %v2139 = vsel %vm2071, %v2056, 0
        %v2142 = vsel %vm2071, %v2057, 0
        %v2145 = vsel %vm2071, %v2058, 0
        %v2148 = vsel %vm2071, %v2059, 0
        %v2151 = vsel %vm2071, %v2060, 0
        %v2154 = vsel %vm2071, %v2061, 0
        %v2157 = vsel %vm2071, %v2062, 0
        %v2160 = vsel %vm2071, %v2063, 0
        %v2163 = vsel %vm2071, %v2064, 0
        %v2166 = vsel %vm2071, %v2065, 0
        %vm2168 = vcmask 1043456
        %v2170 = vsel %vm2168, %v2070, 0
        %2172 = vmatprep.subr.mxu0 0.0
        %2173 = vmatpush1.msra.mxu0 0.0
        %2174 = vmatprep.subr.mxu0 0.0
        %2175 = vmatpush1.msra.mxu0 0.0
        %2176 = vmatprep.subr.mxu0 0.0
        %2177 = vmatpush1.msra.mxu0 0.0
        %2178 = vmatprep.subr.mxu0 0.0
        %2179 = vmatpush1.msra.mxu0 0.0
        %2180 = vmatprep.subr.mxu0 0.0
        %2181 = vmatpush1.msra.mxu0 0.0
        %2182 = vmatprep.subr.mxu0 0.0
        %2183 = vmatpush1.msra.mxu0 0.0
        %2184 = vmatprep.subr.mxu0 0.0
        %2185 = vmatpush1.msra.mxu0 0.0
        %2186 = vmatprep.subr.mxu0 0.0
        %2187 = vmatpush1.msra.mxu0 0.0
        %2188 = vmatprep.subr.mxu0 0.0
        %2189 = vmatpush1.msra.mxu0 0.0
        %2190 = vmatprep.subr.mxu0 0.0
        %2191 = vmatpush1.msra.mxu0 0.0
        %2192 = vmatprep.subr.mxu0 0.0
        %2193 = vmatpush1.msra.mxu0 0.0
        %2194 = vmatprep.subr.mxu0 0.0
        %2195 = vmatpush1.msra.mxu0 %v2170
        %2196 = vmatprep.subr.mxu0 0.0
        %2197 = vmatpush1.msra.mxu0 %v2069
        %2198 = vmatprep.subr.mxu0 0.0
        %2199 = vmatpush1.msra.mxu0 %v2068
        %2200 = vmatprep.subr.mxu0 0.0
        %2201 = vmatpush1.msra.mxu0 %v2067
        %2202 = vmatprep.subr.mxu0 0.0
        %2203 = vmatpush1.msra.mxu0 %v2066
        %2204 = vmatprep.subr.mxu0 0.0
        %2205 = vmatpush2.msra.mxu0 0.0
        %2206 = vmatprep.subr.mxu0 0.0
        %2207 = vmatpush2.msra.mxu0 0.0
        %2208 = vmatprep.subr.mxu0 0.0
        %2209 = vmatpush2.msra.mxu0 0.0
        %2210 = vmatprep.subr.mxu0 0.0
        %2211 = vmatpush2.msra.mxu0 0.0
        %2212 = vmatprep.subr.mxu0 0.0
        %2213 = vmatpush2.msra.mxu0 0.0
        %2214 = vmatprep.subr.mxu0 0.0
        %2215 = vmatpush2.msra.mxu0 0.0
        %2216 = vmatprep.subr.mxu0 0.0
        %2217 = vmatpush2.msra.mxu0 0.0
        %2218 = vmatprep.subr.mxu0 0.0
        %2219 = vmatpush2.msra.mxu0 0.0
        %2220 = vmatprep.subr.mxu0 0.0
        %2221 = vmatpush2.msra.mxu0 0.0
        %2222 = vmatprep.subr.mxu0 0.0
        %2223 = vmatpush2.msra.mxu0 0.0
        %2224 = vmatprep.subr.mxu0 0.0
        %2225 = vmatpush2.msra.mxu0 0.0
        %2226 = vmatprep.subr.mxu0 0.0
        %2227 = vmatpush2.msra.mxu0 0.0
        %2228 = vmatprep.subr.mxu0 0.0
        %2229 = vmatpush2.msra.mxu0 0.0
        %2230 = vmatprep.subr.mxu0 0.0
        %2231 = vmatpush2.msra.mxu0 0.0
        %2232 = vmatprep.subr.mxu0 0.0
        %2233 = vmatpush2.msra.mxu0 0.0
        %2234 = vmatprep.subr.mxu0 0.0
        %2235 = vmatpush2.msra.mxu0 0.0
        %2236 = vmatprep.mubr.f32.mxu0 0.0
        %2237 = vmatmul.mubr.f32.gmra.mxu0 %v2073
        %v2238 = vpop.f32.mrf.mxu0
        %v2239 = vadd.f32 0.0, %v2238
        %v2240 = vpop.f32.mrf.mxu0
        %2241 = vmatprep.mubr.f32.mxu0 0.0
        %2242 = vmatmul.mubr.f32.gmra.mxu0 %v2076
        %v2243 = vpop.f32.mrf.mxu0
        %v2244 = vadd.f32 0.0, %v2243
        %v2245 = vpop.f32.mrf.mxu0
        %2246 = vmatprep.mubr.f32.mxu0 0.0
        %2247 = vmatmul.mubr.f32.gmra.mxu0 %v2079
        %v2248 = vpop.f32.mrf.mxu0
        %v2249 = vadd.f32 0.0, %v2248
        %v2250 = vpop.f32.mrf.mxu0
        %2251 = vmatprep.mubr.f32.mxu0 0.0
        %2252 = vmatmul.mubr.f32.gmra.mxu0 %v2082
        %v2253 = vpop.f32.mrf.mxu0
        %v2254 = vadd.f32 0.0, %v2253
        %v2255 = vpop.f32.mrf.mxu0
        %2256 = vmatprep.mubr.f32.mxu0 0.0
        %2257 = vmatmul.mubr.f32.gmra.mxu0 %v2085
        %v2258 = vpop.f32.mrf.mxu0
        %v2259 = vadd.f32 0.0, %v2258
        %v2260 = vpop.f32.mrf.mxu0
        %2261 = vmatprep.mubr.f32.mxu0 0.0
        %2262 = vmatmul.mubr.f32.gmra.mxu0 %v2088
        %v2263 = vpop.f32.mrf.mxu0
        %v2264 = vadd.f32 0.0, %v2263
        %v2265 = vpop.f32.mrf.mxu0
        %2266 = vmatprep.mubr.f32.mxu0 0.0
        %2267 = vmatmul.mubr.f32.gmra.mxu0 %v2091
        %v2268 = vpop.f32.mrf.mxu0
        %v2269 = vadd.f32 0.0, %v2268
        %v2270 = vpop.f32.mrf.mxu0
        %2271 = vmatprep.mubr.f32.mxu0 0.0
        %2272 = vmatmul.mubr.f32.gmra.mxu0 %v2094
        %v2273 = vpop.f32.mrf.mxu0
        %v2274 = vadd.f32 0.0, %v2273
        %v2275 = vpop.f32.mrf.mxu0
        %2276 = vmatprep.mubr.f32.mxu0 0.0
        %2277 = vmatmul.mubr.f32.gmra.mxu0 %v2097
        %v2278 = vpop.f32.mrf.mxu0
        %v2279 = vadd.f32 0.0, %v2278
        %v2280 = vpop.f32.mrf.mxu0
        %2281 = vmatprep.mubr.f32.mxu0 0.0
        %2282 = vmatmul.mubr.f32.gmra.mxu0 %v2100
        %v2283 = vpop.f32.mrf.mxu0
        %v2284 = vadd.f32 0.0, %v2283
        %v2285 = vpop.f32.mrf.mxu0
        %2286 = vmatprep.mubr.f32.mxu0 0.0
        %2287 = vmatmul.mubr.f32.gmra.mxu0 %v2103
        %v2288 = vpop.f32.mrf.mxu0
        %v2289 = vadd.f32 0.0, %v2288
        %v2290 = vpop.f32.mrf.mxu0
        %2291 = vmatprep.mubr.f32.mxu0 0.0
        %2292 = vmatmul.mubr.f32.gmra.mxu0 %v2106
        %v2293 = vpop.f32.mrf.mxu0
        %v2294 = vadd.f32 0.0, %v2293
        %v2295 = vpop.f32.mrf.mxu0
        %2296 = vmatprep.mubr.f32.mxu0 0.0
        %2297 = vmatmul.mubr.f32.gmra.mxu0 %v2109
        %v2298 = vpop.f32.mrf.mxu0
        %v2299 = vadd.f32 0.0, %v2298
        %v2300 = vpop.f32.mrf.mxu0
        %2301 = vmatprep.mubr.f32.mxu0 0.0
        %2302 = vmatmul.mubr.f32.gmra.mxu0 %v2112
        %v2303 = vpop.f32.mrf.mxu0
        %v2304 = vadd.f32 0.0, %v2303
        %v2305 = vpop.f32.mrf.mxu0
        %2306 = vmatprep.mubr.f32.mxu0 0.0
        %2307 = vmatmul.mubr.f32.gmra.mxu0 %v2115
        %v2308 = vpop.f32.mrf.mxu0
        %v2309 = vadd.f32 0.0, %v2308
        %v2310 = vpop.f32.mrf.mxu0
        %2311 = vmatprep.mubr.f32.mxu0 0.0
        %2312 = vmatmul.mubr.f32.gmra.mxu0 %v2118
        %v2313 = vpop.f32.mrf.mxu0
        %v2314 = vadd.f32 0.0, %v2313
        %v2315 = vpop.f32.mrf.mxu0
        %2316 = vmatprep.mubr.f32.mxu0 0.0
        %2317 = vmatmul.mubr.f32.gmra.mxu0 %v2121
        %v2318 = vpop.f32.mrf.mxu0
        %v2319 = vadd.f32 0.0, %v2318
        %v2320 = vpop.f32.mrf.mxu0
        %2321 = vmatprep.mubr.f32.mxu0 0.0
        %2322 = vmatmul.mubr.f32.gmra.mxu0 %v2124
        %v2323 = vpop.f32.mrf.mxu0
        %v2324 = vadd.f32 0.0, %v2323
        %v2325 = vpop.f32.mrf.mxu0
        %2326 = vmatprep.mubr.f32.mxu0 0.0
        %2327 = vmatmul.mubr.f32.gmra.mxu0 %v2127
        %v2328 = vpop.f32.mrf.mxu0
        %v2329 = vadd.f32 0.0, %v2328
        %v2330 = vpop.f32.mrf.mxu0
        %2331 = vmatprep.mubr.f32.mxu0 0.0
        %2332 = vmatmul.mubr.f32.gmra.mxu0 %v2130
        %v2333 = vpop.f32.mrf.mxu0
        %v2334 = vadd.f32 0.0, %v2333
        %v2335 = vpop.f32.mrf.mxu0
        %2336 = vmatprep.mubr.f32.mxu0 0.0
        %2337 = vmatmul.mubr.f32.gmra.mxu0 %v2133
        %v2338 = vpop.f32.mrf.mxu0
        %v2339 = vadd.f32 0.0, %v2338
        %v2340 = vpop.f32.mrf.mxu0
        %2341 = vmatprep.mubr.f32.mxu0 0.0
        %2342 = vmatmul.mubr.f32.gmra.mxu0 %v2136
        %v2343 = vpop.f32.mrf.mxu0
        %v2344 = vadd.f32 0.0, %v2343
        %v2345 = vpop.f32.mrf.mxu0
        %2346 = vmatprep.mubr.f32.mxu0 0.0
        %2347 = vmatmul.mubr.f32.gmra.mxu0 %v2139
        %v2348 = vpop.f32.mrf.mxu0
        %v2349 = vadd.f32 0.0, %v2348
        %v2350 = vpop.f32.mrf.mxu0
        %2351 = vmatprep.mubr.f32.mxu0 0.0
        %2352 = vmatmul.mubr.f32.gmra.mxu0 %v2142
        %v2353 = vpop.f32.mrf.mxu0
        %v2354 = vadd.f32 0.0, %v2353
        %v2355 = vpop.f32.mrf.mxu0
        %2356 = vmatprep.mubr.f32.mxu0 0.0
        %2357 = vmatmul.mubr.f32.gmra.mxu0 %v2145
        %v2358 = vpop.f32.mrf.mxu0
        %v2359 = vadd.f32 0.0, %v2358
        %v2360 = vpop.f32.mrf.mxu0
        %2361 = vmatprep.mubr.f32.mxu0 0.0
        %2362 = vmatmul.mubr.f32.gmra.mxu0 %v2148
        %v2363 = vpop.f32.mrf.mxu0
        %v2364 = vadd.f32 0.0, %v2363
        %v2365 = vpop.f32.mrf.mxu0
        %2366 = vmatprep.mubr.f32.mxu0 0.0
        %2367 = vmatmul.mubr.f32.gmra.mxu0 %v2151
        %v2368 = vpop.f32.mrf.mxu0
        %v2369 = vadd.f32 0.0, %v2368
        %v2370 = vpop.f32.mrf.mxu0
        %2371 = vmatprep.mubr.f32.mxu0 0.0
        %2372 = vmatmul.mubr.f32.gmra.mxu0 %v2154
        %v2373 = vpop.f32.mrf.mxu0
        %v2374 = vadd.f32 0.0, %v2373
        %v2375 = vpop.f32.mrf.mxu0
        %2376 = vmatprep.mubr.f32.mxu0 0.0
        %2377 = vmatmul.mubr.f32.gmra.mxu0 %v2157
        %v2378 = vpop.f32.mrf.mxu0
        %v2379 = vadd.f32 0.0, %v2378
        %v2380 = vpop.f32.mrf.mxu0
        %2381 = vmatprep.mubr.f32.mxu0 0.0
        %2382 = vmatmul.mubr.f32.gmra.mxu0 %v2160
        %v2383 = vpop.f32.mrf.mxu0
        %v2384 = vadd.f32 0.0, %v2383
        %v2385 = vpop.f32.mrf.mxu0
        %2386 = vmatprep.mubr.f32.mxu0 0.0
        %2387 = vmatmul.mubr.f32.gmra.mxu0 %v2163
        %v2388 = vpop.f32.mrf.mxu0
        %v2389 = vadd.f32 0.0, %v2388
        %v2390 = vpop.f32.mrf.mxu0
        %2391 = vmatprep.mubr.f32.mxu0 0.0
        %2392 = vmatmul.mubr.f32.gmra.mxu0 %v2166
        %v2393 = vpop.f32.mrf.mxu0
        %v2394 = vadd.f32 0.0, %v2393
        %v2395 = vpop.f32.mrf.mxu0
        %2396 = vdwg.mxu0
        %2397 = vxpose.xlu0.b32.start [1/16] %v2239, 128
        %2398 = vxpose.xlu0.b32.cont [2/16] %v2244, 128
        %2399 = vxpose.xlu0.b32.cont [3/16] %v2249, 128
        %2400 = vxpose.xlu0.b32.cont [4/16] %v2254, 128
        %2401 = vxpose.xlu0.b32.cont [5/16] %v2259, 128
        %2402 = vxpose.xlu0.b32.cont [6/16] %v2264, 128
        %2403 = vxpose.xlu0.b32.cont [7/16] %v2269, 128
        %2404 = vxpose.xlu0.b32.cont [8/16] %v2274, 128
        %2405 = vxpose.xlu0.b32.cont [9/16] %v2279, 128
        %2406 = vxpose.xlu0.b32.cont [10/16] %v2284, 128
        %2407 = vxpose.xlu0.b32.cont [11/16] %v2289, 128
        %2408 = vxpose.xlu0.b32.cont [12/16] %v2294, 128
        %2409 = vxpose.xlu0.b32.cont [13/16] %v2299, 128
        %2410 = vxpose.xlu0.b32.cont [14/16] %v2304, 128
        %2411 = vxpose.xlu0.b32.cont [15/16] %v2309, 128
        %2412 = vxpose.xlu0.b32.end [16/16] %v2314, 128
        %v2413 = vpop.trf.xlu0
        %v2414 = vpop.trf.xlu0
        %v2415 = vpop.trf.xlu0
        %v2416 = vpop.trf.xlu0
        %v2417 = vpop.trf.xlu0
        %v2418 = vpop.trf.xlu0
        %v2419 = vpop.trf.xlu0
        %v2420 = vpop.trf.xlu0
        %v2421 = vpop.trf.xlu0
        %v2422 = vpop.trf.xlu0
        %v2423 = vpop.trf.xlu0
        %v2424 = vpop.trf.xlu0
        %v2425 = vpop.trf.xlu0
        %v2426 = vpop.trf.xlu0
        %v2427 = vpop.trf.xlu0
        %v2428 = vpop.trf.xlu0
        %2429 = vxpose.xlu0.b32.start [1/16] %v2319, 128
        %2430 = vxpose.xlu0.b32.cont [2/16] %v2324, 128
        %2431 = vxpose.xlu0.b32.cont [3/16] %v2329, 128
        %2432 = vxpose.xlu0.b32.cont [4/16] %v2334, 128
        %2433 = vxpose.xlu0.b32.cont [5/16] %v2339, 128
        %2434 = vxpose.xlu0.b32.cont [6/16] %v2344, 128
        %2435 = vxpose.xlu0.b32.cont [7/16] %v2349, 128
        %2436 = vxpose.xlu0.b32.cont [8/16] %v2354, 128
        %2437 = vxpose.xlu0.b32.cont [9/16] %v2359, 128
        %2438 = vxpose.xlu0.b32.cont [10/16] %v2364, 128
        %2439 = vxpose.xlu0.b32.cont [11/16] %v2369, 128
        %2440 = vxpose.xlu0.b32.cont [12/16] %v2374, 128
        %2441 = vxpose.xlu0.b32.cont [13/16] %v2379, 128
        %2442 = vxpose.xlu0.b32.cont [14/16] %v2384, 128
        %2443 = vxpose.xlu0.b32.cont [15/16] %v2389, 128
        %2444 = vxpose.xlu0.b32.end [16/16] %v2394, 128
        %v2445 = vpop.trf.xlu0
        %v2446 = vpop.trf.xlu0
        %v2447 = vpop.trf.xlu0
        %v2448 = vpop.trf.xlu0
        %v2449 = vpop.trf.xlu0
        %v2450 = vpop.trf.xlu0
        %v2451 = vpop.trf.xlu0
        %v2452 = vpop.trf.xlu0
        %v2453 = vpop.trf.xlu0
        %v2454 = vpop.trf.xlu0
        %v2455 = vpop.trf.xlu0
        %v2456 = vpop.trf.xlu0
        %v2457 = vpop.trf.xlu0
        %v2458 = vpop.trf.xlu0
        %v2459 = vpop.trf.xlu0
        %v2460 = vpop.trf.xlu0
        %v2461 = vld [vmem:[%s259] sm:$0xf]
        %2463 = vset.pattern.permute.xlu0 0
        %2464 = vperm.xlu0 %2463, %v2461
        %v2465 = vpop.permute.xlu0 %2464
        %v2467 = vmul.f32 %v2413, %v2465
        %v2468 = vmul.f32 %v2445, %v2465
        %v2469 = vld [vmem:[%s263] sm:$0xf]
        %2471 = vset.pattern.permute.xlu0 0
        %2472 = vperm.xlu0 %2471, %v2469
        %v2473 = vpop.permute.xlu0 %2472
        %v2475 = vadd.f32 %v2467, %v2473
        %v2476 = vadd.f32 %v2468, %v2473
        %v2477 = vmax.f32 %v2475, 0.0
        %v2478 = vmax.f32 %v2476, 0.0
        %v2481 = vcombine.low %v2477, %v2478
        %2483 = vst [vmem:[%s244] sm:$0xff] %v2481
        %v2484 = vand.u32 2147483647, %v2477
        %v2485 = vand.u32 2147483647, %v2478
        %v2486 = vsel %vm2168, %v2484, 0.0
        %v2487 = vsel %vm2168, %v2485, 0.0
        %v2488 = vadd.f32 %v2486, %v2487
        %2489 = vadd.xlane.f32.xlu0 %v2488
        %v2490 = vpop.xlane.xlu0 %2489
        %v2491 = vrcp.pop 256.0
        %v2492 = vmul.f32 %v2490, %v2491
        %vm2493 = vcmask 3072
        %2494 = vst.msk [vmem:[%s267] sm:$0xf] %vm2493, %v2492
        %s2495 = sand.u32 %s127, 1
        %s2496 = scalar_lea.sflag [#allocation5], %s2495
        %s2497 = sand.u32 %s127, 1
        %s2498 = smul.addr %s2497, 8
        %s2499 = scalar_lea.vmem [#allocation4], %s2498
        %p2500 = scmp.lt.s32.totalorder %s20, 1
        %s2501 = scalar_select %p2500, %s20, 1
        %s2502 = smul.addr %s2501, 4
        %s2503 = scalar_lea.vmem %s5, %s2502
        // Predicated region
        $region37: #{tpu_custom_call.1} parent=35 // pred_check
          %p2504 = pneg %p137
        $region38: #{tpu_custom_call.1} parent=35 // pred_check_branch
          %2506 = sbr.rel (%p2504) target = $region40
        $region39: #{tpu_custom_call.1} parent=35 // pred_region
          %s2508 = ssub.s32 128, 128
          %2509 = vsyncadd %s2496, %s2508
          %s2510 = smul.addr %s20, 2
          %s2511 = smul.addr %s2510, 64
          %s2512 = scalar_lea.hbm %s4, %s2511
          %s2514 = sshll.u32 %s2499, 4
          %s2515 = int_to_ptr.vmem [resolvable:$true] %s2514
          %2517 = dma.vmem_to_hbm [thread:$0]  %s2515, 128, %s2512, %s2496
        $region40: #{tpu_custom_call.1} parent=35 // pred_fallthru
          _
        // Predicated region
        $region41: #{tpu_custom_call.1} parent=35 // pred_check
          %p2518 = pneg %p163
        $region42: #{tpu_custom_call.1} parent=35 // pred_check_branch
          %2520 = sbr.rel (%p2518) target = $region44
        $region43: #{tpu_custom_call.1} parent=35 // pred_region
          _
        $region44: #{tpu_custom_call.1} parent=35 // pred_fallthru
          _
      $region36: #{tpu_custom_call.1} parent=5 // pred_fallthru
        _
      %p2521 = scmp.le.s32.totalorder 2, %s15
      // Predicated region
      $region45: #{tpu_custom_call.1} parent=5 // pred_check
        %p2522 = pneg %p2521
      $region46: #{tpu_custom_call.1} parent=5 // pred_check_branch
        %2524 = sbr.rel (%p2522) target = $region48
      $region47: #{tpu_custom_call.1} parent=5 // pred_region
        %s2525 = ssub.s32 %s15, 2
        // Predicated region
        $region49: #{tpu_custom_call.1} parent=47 // pred_check
          %p2526 = pneg %p143
        $region50: #{tpu_custom_call.1} parent=47 // pred_check_branch
          %2528 = sbr.rel (%p2526) target = $region52
        $region51: #{tpu_custom_call.1} parent=47 // pred_region
          %s2529 = sand.u32 %s128, 1
          %s2530 = scalar_lea.sflag [#allocation5], %s2529
          %s2531 = sand.u32 %s128, 1
          %s2532 = smul.addr %s2531, 8
          %s2533 = scalar_lea.vmem [#allocation4], %s2532
          %2534 = dma.done %s2530, 128
        $region52: #{tpu_custom_call.1} parent=47 // pred_fallthru
          _
        // Predicated region
        $region53: #{tpu_custom_call.1} parent=47 // pred_check
          %p2535 = pneg %p169
        $region54: #{tpu_custom_call.1} parent=47 // pred_check_branch
          %2537 = sbr.rel (%p2535) target = $region56
        $region55: #{tpu_custom_call.1} parent=47 // pred_region
          %p2538 = scmp.lt.s32.totalorder %s21, 1
          %s2539 = scalar_select %p2538, %s21, 1
          %s2540 = smul.addr %s2539, 4
          %s2541 = scalar_lea.vmem %s5, %s2540
        $region56: #{tpu_custom_call.1} parent=47 // pred_fallthru
          _
      $region48: #{tpu_custom_call.1} parent=5 // pred_fallthru
        _
    $region6: #{tpu_custom_call.1} parent=1 // loop_footer
      %s19 = sadd.s32 1, %s15
    $region7: #{tpu_custom_call.1} parent=1 // loop_footer_branch
      %14 = sbr.rel target = $region3
    $region8: #{tpu_custom_call.1} parent=1 // loop_exit
      _
    %2542 = vsyncpa [#allocation5], 1
    %s2543 = scalar_lea.sflag [#allocation5], 1
    %2544 = vsyncpa %s2543, 1

</llo_original>
